<compile_context>
chip_gen: v6e
topology: v6e:2x2x1
jax: 0.10.0
libtpu: 0.0.40
codegen_flags: <defaults>
</compile_context>

<pallas_src>
import functools

import jax
import jax.numpy as jnp
from jax import lax
from jax.experimental import pallas as pl
from jax.experimental.pallas import tpu as pltpu


def _round_up(x, m):
    return ((x + m - 1) // m) * m


def _block_diag_mask(hm, m, dtype=jnp.float32):
    """(HM, HM) mask, 1 inside each head's (M, M) diagonal block. Wrapper-side."""
    rh = lax.broadcasted_iota(jnp.int32, (hm, hm), 0) // m
    ch = lax.broadcasted_iota(jnp.int32, (hm, hm), 1) // m
    return (rh == ch).astype(dtype)


# ---------------------------------------------------------------------------
# Phase 1: partial global reductions (per split): K^T V, ks_sum, ||Q||^2, ||K||^2
# ---------------------------------------------------------------------------
def _reduce_accumulate(q, k, v, kv_ref, stats_ref, ks_acc, sq_acc, sk_acc,
                       *, matmul_dtype):
    j = pl.program_id(1)

    @pl.when(j == 0)
    def _init():
        kv_ref[...] = jnp.zeros_like(kv_ref)
        stats_ref[...] = jnp.zeros_like(stats_ref)
        ks_acc[...] = jnp.zeros_like(ks_acc)
        sq_acc[...] = jnp.zeros_like(sq_acc)
        sk_acc[...] = jnp.zeros_like(sk_acc)

    # K^T @ V without materializing a transpose; bf16 operands on the fast
    # path, f32 accumulation in the resident output block.
    kv_ref[...] += lax.dot_general(
        k.astype(matmul_dtype), v.astype(matmul_dtype),
        dimension_numbers=(((0,), (0,)), ((), ())),
        preferred_element_type=jnp.float32)

    ks_acc[...] += jnp.sum(k, axis=0, keepdims=True)
    sq_acc[...] += jnp.sum(q * q, axis=0, keepdims=True)
    sk_acc[...] += jnp.sum(k * k, axis=0, keepdims=True)

    @pl.when(j == pl.num_programs(1) - 1)
    def _finalize():
        stats_ref[0:1, :] = ks_acc[...]
        stats_ref[1:2, :] = sq_acc[...]
        stats_ref[2:3, :] = sk_acc[...]


def _reduce_kernel_shared(x_ref, w_ref, b_ref, kv_ref, stats_ref,
                          ks_acc, sq_acc, sk_acc, *, hm, matmul_dtype):
    # Single fused (C_in, 3*HM) projection: [Q | K | V].
    proj = jnp.dot(x_ref[...], w_ref[...],
                   preferred_element_type=jnp.float32) + b_ref[...]
    q = proj[:, :hm]
    k = proj[:, hm:2 * hm]
    v = proj[:, 2 * hm:]
    _reduce_accumulate(q, k, v, kv_ref, stats_ref, ks_acc, sq_acc, sk_acc,
                       matmul_dtype=matmul_dtype)


def _reduce_kernel_separate(xq_ref, xs_ref, wq_ref, bq_ref, wkv_ref, bkv_ref,
                            kv_ref, stats_ref, ks_acc, sq_acc, sk_acc,
                            *, hm, matmul_dtype):
    q = jnp.dot(xq_ref[...], wq_ref[...],
                preferred_element_type=jnp.float32) + bq_ref[...]
    kv_proj = jnp.dot(xs_ref[...], wkv_ref[...],
                      preferred_element_type=jnp.float32) + bkv_ref[...]
    k = kv_proj[:, :hm]
    v = kv_proj[:, hm:]
    _reduce_accumulate(q, k, v, kv_ref, stats_ref, ks_acc, sq_acc, sk_acc,
                       matmul_dtype=matmul_dtype)


# ---------------------------------------------------------------------------
# Phase 2: per-query-tile output via one fused 256-wide matmul.
# ---------------------------------------------------------------------------
def _output_body(q, v, combo_ref, o_ref, *, hm, n_valid, matmul_dtype,
                 approx_recip):
    n_f = jnp.float32(n_valid)   # GLOBAL node count, independent of tiling
    # One 256-wide MXU matmul: columns [0:hm) = numerator part,
    # [hm:2hm) = per-head normalizer broadcast to HM lanes.
    prod = jnp.dot(q.astype(matmul_dtype), combo_ref[...],
                   preferred_element_type=jnp.float32)
    num = prod[:, :hm] + n_f * v
    normalizer = prod[:, hm:] + n_f
    if approx_recip:
        out = num * pl.reciprocal(normalizer, approx=True)
    else:
        out = num / normalizer
    o_ref[...] = out.astype(o_ref.dtype)


def _output_kernel_shared(x_ref, w_ref, b_ref, combo_ref, o_ref,
                          *, hm, n_valid, matmul_dtype, approx_recip):
    proj = jnp.dot(x_ref[...], w_ref[...],
                   preferred_element_type=jnp.float32) + b_ref[...]
    q = proj[:, :hm]
    v = proj[:, hm:]
    _output_body(q, v, combo_ref, o_ref, hm=hm, n_valid=n_valid,
                 matmul_dtype=matmul_dtype, approx_recip=approx_recip)


def _output_kernel_separate(xq_ref, xs_ref, wq_ref, bq_ref, wv_ref, bv_ref,
                            combo_ref, o_ref,
                            *, hm, n_valid, matmul_dtype, approx_recip):
    q = jnp.dot(xq_ref[...], wq_ref[...],
                preferred_element_type=jnp.float32) + bq_ref[...]
    v = jnp.dot(xs_ref[...], wv_ref[...],
                preferred_element_type=jnp.float32) + bv_ref[...]
    _output_body(q, v, combo_ref, o_ref, hm=hm, n_valid=n_valid,
                 matmul_dtype=matmul_dtype, approx_recip=approx_recip)


# ---------------------------------------------------------------------------
# Wrapper
# ---------------------------------------------------------------------------
def trans_conv_layer(query_input, source_input, params, *, num_heads,
                     out_channels, block_rows=1024,
                     matmul_dtype=jnp.bfloat16, num_splits=None):
    """params: Wq,bq,Wk,bk,Wv,bv in PyTorch Linear convention
    (W: (H*M, C_in), b: (H*M,)). Returns (N, out_channels) float32."""
    n, c_in = query_input.shape
    hm = num_heads * out_channels
    assert source_input.shape == (n, c_in)
    assert block_rows % 8 == 0
    # TODO(synk): pad the head dimension for configurations where H*M is not a
    # multiple of 128 (lane-aligned slicing assumed below).
    assert hm % 128 == 0, "H*M must be a multiple of 128"

    f32 = jnp.float32
    shared = query_input is source_input
    exact = (matmul_dtype == jnp.float32)
    out_dtype = f32 if exact else jnp.bfloat16

    wq_t = params["Wq"].T.astype(matmul_dtype)                 # (C_in, HM)
    wk_t = params["Wk"].T.astype(matmul_dtype)
    wv_t = params["Wv"].T.astype(matmul_dtype)
    bq = params["bq"].astype(f32)                              # (HM,)
    bk = params["bk"].astype(f32)
    bv = params["bv"].astype(f32)

    tn = min(block_rows, _round_up(n, 8))
    total_tiles = pl.cdiv(n, tn)
    if num_splits is None:
        num_splits = 2 if total_tiles >= 2 else 1              # v7x: 2 TCs
    tiles_per_split = pl.cdiv(total_tiles, num_splits)
    n_pad = num_splits * tiles_per_split * tn
    n_extra = n_pad - n

    xq = query_input.astype(matmul_dtype)
    if n_extra:
        xq = jnp.pad(xq, ((0, n_extra), (0, 0)))
    if shared:
        xs = xq
    else:
        xs = source_input.astype(matmul_dtype)
        if n_extra:
            xs = jnp.pad(xs, ((0, n_extra), (0, 0)))

    row_spec1 = pl.BlockSpec((tn, c_in),
                             lambda s, j: (s * tiles_per_split + j, 0))

    def rep1(shape):
        return pl.BlockSpec(shape, lambda s, j: (0, 0))

    cp1 = pltpu.CompilerParams(dimension_semantics=("parallel", "arbitrary"),
                               vmem_limit_bytes=32 * 1024 * 1024)
    cp2 = pltpu.CompilerParams(dimension_semantics=("parallel",),
                               vmem_limit_bytes=32 * 1024 * 1024)

    scratch1 = [pltpu.VMEM((1, hm), f32),
                pltpu.VMEM((1, hm), f32),
                pltpu.VMEM((1, hm), f32)]
    out_shapes1 = (jax.ShapeDtypeStruct((num_splits * hm, hm), f32),
                   jax.ShapeDtypeStruct((num_splits * 8, hm), f32))
    out_specs1 = (pl.BlockSpec((hm, hm), lambda s, j: (s, 0)),
                  pl.BlockSpec((8, hm), lambda s, j: (s, 0)))

    # ----- Phase 1: per-split partial reductions --------------------------
    if shared:
        w_qkv = jnp.concatenate([wq_t, wk_t, wv_t], axis=1)          # (C, 3HM)
        b_qkv = jnp.concatenate([bq, bk, bv]).reshape(1, 3 * hm)
        kernel1 = functools.partial(_reduce_kernel_shared,
                                    hm=hm, matmul_dtype=matmul_dtype)
        kv_part, stats_part = pl.pallas_call(
            kernel1,
            out_shape=out_shapes1,
            grid=(num_splits, tiles_per_split),
            in_specs=[row_spec1, rep1((c_in, 3 * hm)), rep1((1, 3 * hm))],
            out_specs=out_specs1,
            scratch_shapes=scratch1,
            compiler_params=cp1,
        )(xq, w_qkv, b_qkv)
    else:
        w_kv = jnp.concatenate([wk_t, wv_t], axis=1)                 # (C, 2HM)
        b_kv = jnp.concatenate([bk, bv]).reshape(1, 2 * hm)
        kernel1 = functools.partial(_reduce_kernel_separate,
                                    hm=hm, matmul_dtype=matmul_dtype)
        kv_part, stats_part = pl.pallas_call(
            kernel1,
            out_shape=out_shapes1,
            grid=(num_splits, tiles_per_split),
            in_specs=[row_spec1, row_spec1,
                      rep1((c_in, hm)), rep1((1, hm)),
                      rep1((c_in, 2 * hm)), rep1((1, 2 * hm))],
            out_specs=out_specs1,
            scratch_shapes=scratch1,
            compiler_params=cp1,
        )(xq, xs, wq_t, bq.reshape(1, hm), w_kv, b_kv)

    # ----- Combine (tiny, plain JAX): sum splits, padded-row correction,
    # norm scale, block-diagonal mask folded into one (HM, 2*HM) matrix ----
    kv = kv_part.reshape(num_splits, hm, hm).sum(axis=0)
    stats = stats_part.reshape(num_splits, 8, hm).sum(axis=0)
    ksum = stats[0]
    sq = jnp.sum(stats[1])
    sk = jnp.sum(stats[2])

    if n_extra:
        # Padded rows (x = 0) project to exactly the bias: subtract their
        # contribution once instead of masking every tile in the hot loop.
        ne = jnp.float32(n_extra)
        bk_c = bk.astype(matmul_dtype).astype(f32)   # what the MXU actually saw
        bv_c = bv.astype(matmul_dtype).astype(f32)
        kv = kv - ne * jnp.outer(bk_c, bv_c)
        ksum = ksum - ne * bk
        sq = sq - ne * jnp.sum(bq * bq)
        sk = sk - ne * jnp.sum(bk * bk)

    inv = 1.0 / (jnp.sqrt(sq) * jnp.sqrt(sk))        # 1 / (||Q||_F * ||K||_F)
    mask = _block_diag_mask(hm, out_channels)
    combo = jnp.concatenate([kv * mask, ksum[:, None] * mask], axis=1) * inv
    combo = combo.astype(matmul_dtype)               # (HM, 2*HM)

    # ----- Phase 2: per-tile outputs (parallel over row tiles) ------------
    grid2 = (num_splits * tiles_per_split,)
    row_spec2 = pl.BlockSpec((tn, c_in), lambda i: (i, 0))

    def rep2(shape):
        return pl.BlockSpec(shape, lambda i: (0, 0))

    out_spec2 = pl.BlockSpec((tn, hm), lambda i: (i, 0))
    out_shape2 = jax.ShapeDtypeStruct((n_pad, hm), out_dtype)

    if shared:
        w_qv = jnp.concatenate([wq_t, wv_t], axis=1)                 # (C, 2HM)
        b_qv = jnp.concatenate([bq, bv]).reshape(1, 2 * hm)
        kernel2 = functools.partial(_output_kernel_shared,
                                    hm=hm, n_valid=n,
                                    matmul_dtype=matmul_dtype,
                                    approx_recip=not exact)
        attn_full = pl.pallas_call(
            kernel2,
            out_shape=out_shape2,
            grid=grid2,
            in_specs=[row_spec2, rep2((c_in, 2 * hm)), rep2((1, 2 * hm)),
                      rep2((hm, 2 * hm))],
            out_specs=out_spec2,
            compiler_params=cp2,
        )(xq, w_qv, b_qv, combo)
    else:
        kernel2 = functools.partial(_output_kernel_separate,
                                    hm=hm, n_valid=n,
                                    matmul_dtype=matmul_dtype,
                                    approx_recip=not exact)
        attn_full = pl.pallas_call(
            kernel2,
            out_shape=out_shape2,
            grid=grid2,
            in_specs=[row_spec2, row_spec2,
                      rep2((c_in, hm)), rep2((1, hm)),
                      rep2((c_in, hm)), rep2((1, hm)),
                      rep2((hm, 2 * hm))],
            out_specs=out_spec2,
            compiler_params=cp2,
        )(xq, xs, wq_t, bq.reshape(1, hm), wv_t, bv.reshape(1, hm), combo)

    # Kernel stores the lane-dense (N, H*M) pre-mean tensor; the cheap head
    # mean runs here so the in-kernel store stays an unmasked 128-wide store.
    attn = attn_full[:n].astype(f32).reshape(n, num_heads, out_channels)
    return jnp.mean(attn, axis=1)


# ---------------------------------------------------------------------------
# Pure-JAX reference (mirror of the PyTorch forward) for verification.
# ---------------------------------------------------------------------------
def reference_forward(query_input, source_input, params, *, num_heads, out_channels):
    hp = lax.Precision.HIGHEST
    H, M = num_heads, out_channels
    q = (jnp.dot(query_input, params["Wq"].T, precision=hp) + params["bq"]).reshape(-1, H, M)
    k = (jnp.dot(source_input, params["Wk"].T, precision=hp) + params["bk"]).reshape(-1, H, M)
    v = (jnp.dot(source_input, params["Wv"].T, precision=hp) + params["bv"]).reshape(-1, H, M)

    q = q / jnp.linalg.norm(q)
    k = k / jnp.linalg.norm(k)
    N = q.shape[0]
    kvs = jnp.einsum("lhm,lhd->hmd", k, v, precision=hp)
    num = jnp.einsum("nhm,hmd->nhd", q, kvs, precision=hp) + N * v
    ks_sum = jnp.sum(k, axis=0)
    normalizer = jnp.einsum("nhm,hm->nh", q, ks_sum, precision=hp)[..., None] + N
    return (num / normalizer).mean(axis=1)


if __name__ == "__main__":
    N, C_IN, C_OUT, HEADS = 1024, 64, 32, 4
    HM = C_OUT * HEADS

    key = jax.random.PRNGKey(0)
    ks = jax.random.split(key, 8)
    scale = 1.0 / jnp.sqrt(jnp.float32(C_IN))
    params = {
        "Wq": jax.random.uniform(ks[0], (HM, C_IN), jnp.float32, -scale, scale),
        "bq": jax.random.uniform(ks[1], (HM,), jnp.float32, -scale, scale),
        "Wk": jax.random.uniform(ks[2], (HM, C_IN), jnp.float32, -scale, scale),
        "bk": jax.random.uniform(ks[3], (HM,), jnp.float32, -scale, scale),
        "Wv": jax.random.uniform(ks[4], (HM, C_IN), jnp.float32, -scale, scale),
        "bv": jax.random.uniform(ks[5], (HM,), jnp.float32, -scale, scale),
    }
    query_input = jax.random.normal(ks[6], (N, C_IN), jnp.float32)
    source_input = jax.random.normal(ks[7], (N, C_IN), jnp.float32)

    ref = reference_forward(query_input, source_input, params,
                            num_heads=HEADS, out_channels=C_OUT)

    # Exact path: f32 matmuls + exact divide, multi-tile grid + 2-way split.
    out_f32 = trans_conv_layer(query_input, source_input, params,
                               num_heads=HEADS, out_channels=C_OUT,
                               block_rows=256, matmul_dtype=jnp.float32)
    out_f32 = jax.block_until_ready(out_f32)
    assert out_f32.shape == (N, C_OUT)
    assert jnp.allclose(out_f32, ref, atol=5e-3, rtol=5e-3), "f32 mismatch vs reference"

    # Ragged N (exercises padding + analytic padded-row correction).
    N2 = 1000
    ref2 = reference_forward(query_input[:N2], source_input[:N2], params,
                             num_heads=HEADS, out_channels=C_OUT)
    out2 = trans_conv_layer(query_input[:N2], source_input[:N2], params,
                            num_heads=HEADS, out_channels=C_OUT,
                            block_rows=256, matmul_dtype=jnp.float32)
    out2 = jax.block_until_ready(out2)
    assert out2.shape == (N2, C_OUT)
    assert jnp.allclose(out2, ref2, atol=5e-3, rtol=5e-3), "ragged-N mismatch"

    # Shared-input path (query_input is source_input): fused QKV projection.
    ref3 = reference_forward(query_input, query_input, params,
                             num_heads=HEADS, out_channels=C_OUT)
    out3 = trans_conv_layer(query_input, query_input, params,
                            num_heads=HEADS, out_channels=C_OUT,
                            block_rows=256, matmul_dtype=jnp.float32)
    out3 = jax.block_until_ready(out3)
    assert out3.shape == (N, C_OUT)
    assert jnp.allclose(out3, ref3, atol=5e-3, rtol=5e-3), "shared-input mismatch"

    # Fast path: bf16 MXU operands everywhere (f32 accumulate), approx
    # reciprocal, bf16 output store, default (large) row tile.
    out_bf16 = trans_conv_layer(query_input, source_input, params,
                                num_heads=HEADS, out_channels=C_OUT,
                                matmul_dtype=jnp.bfloat16)
    out_bf16 = jax.block_until_ready(out_bf16)
    assert out_bf16.shape == (N, C_OUT)
    assert jnp.allclose(out_bf16, ref, atol=3e-2, rtol=3e-2), "bf16 mismatch vs reference"

    print("KERNEL_OK")
</pallas_src>

<mosaic_0001>
module attributes {stable_mosaic.version = 11 : i64} {
  func.func @_reduce_kernel_separate(%arg0: i32, %arg1: i32, %arg2: memref<256x64xf32, #tpu.memory_space<vmem>>, %arg3: memref<256x64xf32, #tpu.memory_space<vmem>>, %arg4: memref<64x128xf32, #tpu.memory_space<vmem>>, %arg5: memref<1x128xf32, #tpu.memory_space<vmem>>, %arg6: memref<64x256xf32, #tpu.memory_space<vmem>>, %arg7: memref<1x256xf32, #tpu.memory_space<vmem>>, %arg8: memref<128x128xf32, #tpu.memory_space<vmem>>, %arg9: memref<8x128xf32, #tpu.memory_space<vmem>>, %arg10: memref<1x128xf32, #tpu.memory_space<vmem>>, %arg11: memref<1x128xf32, #tpu.memory_space<vmem>>, %arg12: memref<1x128xf32, #tpu.memory_space<vmem>>) attributes {dimension_semantics = [#tpu.dimension_semantics<parallel>, #tpu.dimension_semantics<arbitrary>], iteration_bounds = array<i64: 2, 2>, scalar_prefetch = 0 : i64, scratch_operands = 3 : i64, tpu.core_type = #tpu.core_type<tc>, window_params = [{transform_indices = @transform_0, window_bounds = array<i64: 256, 64>}, {transform_indices = @transform_1, window_bounds = array<i64: 256, 64>}, {pipeline_mode = #tpu.pipeline_mode<synchronous>, transform_indices = @transform_2, window_bounds = array<i64: 64, 128>}, {pipeline_mode = #tpu.pipeline_mode<synchronous>, transform_indices = @transform_3, window_bounds = array<i64: 1, 128>}, {pipeline_mode = #tpu.pipeline_mode<synchronous>, transform_indices = @transform_4, window_bounds = array<i64: 64, 256>}, {pipeline_mode = #tpu.pipeline_mode<synchronous>, transform_indices = @transform_5, window_bounds = array<i64: 1, 256>}, {transform_indices = @transform_6, window_bounds = array<i64: 128, 128>}, {transform_indices = @transform_7, window_bounds = array<i64: 8, 128>}]} {
    %c0 = arith.constant 0 : index
    %c0_0 = arith.constant 0 : index
    %0 = vector.load %arg2[%c0, %c0_0] : memref<256x64xf32, #tpu.memory_space<vmem>>, vector<256x64xf32>
    %c0_1 = arith.constant 0 : index
    %c0_2 = arith.constant 0 : index
    %1 = vector.load %arg4[%c0_1, %c0_2] : memref<64x128xf32, #tpu.memory_space<vmem>>, vector<64x128xf32>
    %cst = arith.constant dense<0.000000e+00> : vector<256x128xf32>
    %2 = tpu.matmul %0, %1, %cst {dimension_numbers = #tpu.dot_dimension_numbers<[1], [0], [0], [1], [0, 0, 1, 1], [], []>} : vector<256x64xf32>, vector<64x128xf32>, vector<256x128xf32> -> vector<256x128xf32>
    %c0_3 = arith.constant 0 : index
    %c0_4 = arith.constant 0 : index
    %3 = vector.load %arg5[%c0_3, %c0_4] : memref<1x128xf32, #tpu.memory_space<vmem>>, vector<1x128xf32>
    %4 = vector.broadcast %3 : vector<1x128xf32> to vector<256x128xf32>
    %5 = arith.addf %2, %4 : vector<256x128xf32>
    %c0_5 = arith.constant 0 : index
    %c0_6 = arith.constant 0 : index
    %6 = vector.load %arg3[%c0_5, %c0_6] : memref<256x64xf32, #tpu.memory_space<vmem>>, vector<256x64xf32>
    %c0_7 = arith.constant 0 : index
    %c0_8 = arith.constant 0 : index
    %7 = vector.load %arg6[%c0_7, %c0_8] : memref<64x256xf32, #tpu.memory_space<vmem>>, vector<64x256xf32>
    %cst_9 = arith.constant dense<0.000000e+00> : vector<256x256xf32>
    %8 = tpu.matmul %6, %7, %cst_9 {dimension_numbers = #tpu.dot_dimension_numbers<[1], [0], [0], [1], [0, 0, 1, 1], [], []>} : vector<256x64xf32>, vector<64x256xf32>, vector<256x256xf32> -> vector<256x256xf32>
    %c0_10 = arith.constant 0 : index
    %c0_11 = arith.constant 0 : index
    %9 = vector.load %arg7[%c0_10, %c0_11] : memref<1x256xf32, #tpu.memory_space<vmem>>, vector<1x256xf32>
    %10 = vector.broadcast %9 : vector<1x256xf32> to vector<256x256xf32>
    %11 = arith.addf %8, %10 : vector<256x256xf32>
    %12 = vector.extract_strided_slice %11 {offsets = [0, 0], sizes = [256, 128], strides = [1, 1]} : vector<256x256xf32> to vector<256x128xf32>
    %13 = vector.extract_strided_slice %11 {offsets = [0, 128], sizes = [256, 128], strides = [1, 1]} : vector<256x256xf32> to vector<256x128xf32>
    %c0_i32 = arith.constant 0 : i32
    %14 = arith.cmpi eq, %arg1, %c0_i32 : i32
    %15 = arith.extui %14 : i1 to i32
    %c0_i32_12 = arith.constant 0 : i32
    %16 = arith.cmpi ne, %15, %c0_i32_12 : i32
    scf.if %16 {
      %cst_34 = arith.constant 0.000000e+00 : f32
      %41 = vector.broadcast %cst_34 : f32 to vector<128x128xf32>
      %c0_35 = arith.constant 0 : index
      %c0_36 = arith.constant 0 : index
      %42 = vector.load %arg8[%c0_35, %c0_36] : memref<128x128xf32, #tpu.memory_space<vmem>>, vector<128x128xf32>
      tpu.vector_store %arg8[%c0_35, %c0_36], %41 {strides = array<i32>} : memref<128x128xf32, #tpu.memory_space<vmem>>, vector<128x128xf32>,
      %cst_37 = arith.constant 0.000000e+00 : f32
      %43 = vector.broadcast %cst_37 : f32 to vector<8x128xf32>
      %c0_38 = arith.constant 0 : index
      %c0_39 = arith.constant 0 : index
      %44 = vector.load %arg9[%c0_38, %c0_39] : memref<8x128xf32, #tpu.memory_space<vmem>>, vector<8x128xf32>
      tpu.vector_store %arg9[%c0_38, %c0_39], %43 {strides = array<i32>} : memref<8x128xf32, #tpu.memory_space<vmem>>, vector<8x128xf32>,
      %cst_40 = arith.constant 0.000000e+00 : f32
      %45 = vector.broadcast %cst_40 : f32 to vector<1x128xf32>
      %c0_41 = arith.constant 0 : index
      %c0_42 = arith.constant 0 : index
      %46 = vector.load %arg10[%c0_41, %c0_42] : memref<1x128xf32, #tpu.memory_space<vmem>>, vector<1x128xf32>
      tpu.vector_store %arg10[%c0_41, %c0_42], %45 {strides = array<i32>} : memref<1x128xf32, #tpu.memory_space<vmem>>, vector<1x128xf32>,
      %cst_43 = arith.constant 0.000000e+00 : f32
      %47 = vector.broadcast %cst_43 : f32 to vector<1x128xf32>
      %c0_44 = arith.constant 0 : index
      %c0_45 = arith.constant 0 : index
      %48 = vector.load %arg11[%c0_44, %c0_45] : memref<1x128xf32, #tpu.memory_space<vmem>>, vector<1x128xf32>
      tpu.vector_store %arg11[%c0_44, %c0_45], %47 {strides = array<i32>} : memref<1x128xf32, #tpu.memory_space<vmem>>, vector<1x128xf32>,
      %cst_46 = arith.constant 0.000000e+00 : f32
      %49 = vector.broadcast %cst_46 : f32 to vector<1x128xf32>
      %c0_47 = arith.constant 0 : index
      %c0_48 = arith.constant 0 : index
      %50 = vector.load %arg12[%c0_47, %c0_48] : memref<1x128xf32, #tpu.memory_space<vmem>>, vector<1x128xf32>
      tpu.vector_store %arg12[%c0_47, %c0_48], %49 {strides = array<i32>} : memref<1x128xf32, #tpu.memory_space<vmem>>, vector<1x128xf32>,
    } else {
    }
    %c0_13 = arith.constant 0 : index
    %c0_14 = arith.constant 0 : index
    %17 = vector.load %arg8[%c0_13, %c0_14] : memref<128x128xf32, #tpu.memory_space<vmem>>, vector<128x128xf32>
    %cst_15 = arith.constant dense<0.000000e+00> : vector<128x128xf32>
    %18 = tpu.matmul %12, %13, %cst_15 {dimension_numbers = #tpu.dot_dimension_numbers<[0], [0], [1], [1], [0, 1, 1, 1], [], []>} : vector<256x128xf32>, vector<256x128xf32>, vector<128x128xf32> -> vector<128x128xf32>
    %19 = arith.addf %17, %18 : vector<128x128xf32>
    %c0_16 = arith.constant 0 : index
    %c0_17 = arith.constant 0 : index
    %20 = vector.load %arg8[%c0_16, %c0_17] : memref<128x128xf32, #tpu.memory_space<vmem>>, vector<128x128xf32>
    tpu.vector_store %arg8[%c0_16, %c0_17], %19 {strides = array<i32>} : memref<128x128xf32, #tpu.memory_space<vmem>>, vector<128x128xf32>,
    %c0_18 = arith.constant 0 : index
    %c0_19 = arith.constant 0 : index
    %21 = vector.load %arg10[%c0_18, %c0_19] : memref<1x128xf32, #tpu.memory_space<vmem>>, vector<1x128xf32>
    %cst_20 = arith.constant dense<0.000000e+00> : vector<128xf32>
    %22 = vector.multi_reduction <add>, %12, %cst_20 [0] : vector<256x128xf32> to vector<128xf32>
    %23 = vector.shape_cast %22 : vector<128xf32> to vector<1x128xf32>
    %24 = arith.addf %21, %23 : vector<1x128xf32>
    %c0_21 = arith.constant 0 : index
    %c0_22 = arith.constant 0 : index
    %25 = vector.load %arg10[%c0_21, %c0_22] : memref<1x128xf32, #tpu.memory_space<vmem>>, vector<1x128xf32>
    tpu.vector_store %arg10[%c0_21, %c0_22], %24 {strides = array<i32>} : memref<1x128xf32, #tpu.memory_space<vmem>>, vector<1x128xf32>,
    %c0_23 = arith.constant 0 : index
    %c0_24 = arith.constant 0 : index
    %26 = vector.load %arg11[%c0_23, %c0_24] : memref<1x128xf32, #tpu.memory_space<vmem>>, vector<1x128xf32>
    %27 = arith.mulf %5, %5 : vector<256x128xf32>
    %cst_25 = arith.constant dense<0.000000e+00> : vector<128xf32>
    %28 = vector.multi_reduction <add>, %27, %cst_25 [0] : vector<256x128xf32> to vector<128xf32>
    %29 = vector.shape_cast %28 : vector<128xf32> to vector<1x128xf32>
    %30 = arith.addf %26, %29 : vector<1x128xf32>
    %c0_26 = arith.constant 0 : index
    %c0_27 = arith.constant 0 : index
    %31 = vector.load %arg11[%c0_26, %c0_27] : memref<1x128xf32, #tpu.memory_space<vmem>>, vector<1x128xf32>
    tpu.vector_store %arg11[%c0_26, %c0_27], %30 {strides = array<i32>} : memref<1x128xf32, #tpu.memory_space<vmem>>, vector<1x128xf32>,
    %c0_28 = arith.constant 0 : index
    %c0_29 = arith.constant 0 : index
    %32 = vector.load %arg12[%c0_28, %c0_29] : memref<1x128xf32, #tpu.memory_space<vmem>>, vector<1x128xf32>
    %33 = arith.mulf %12, %12 : vector<256x128xf32>
    %cst_30 = arith.constant dense<0.000000e+00> : vector<128xf32>
    %34 = vector.multi_reduction <add>, %33, %cst_30 [0] : vector<256x128xf32> to vector<128xf32>
    %35 = vector.shape_cast %34 : vector<128xf32> to vector<1x128xf32>
    %36 = arith.addf %32, %35 : vector<1x128xf32>
    %c0_31 = arith.constant 0 : index
    %c0_32 = arith.constant 0 : index
    %37 = vector.load %arg12[%c0_31, %c0_32] : memref<1x128xf32, #tpu.memory_space<vmem>>, vector<1x128xf32>
    tpu.vector_store %arg12[%c0_31, %c0_32], %36 {strides = array<i32>} : memref<1x128xf32, #tpu.memory_space<vmem>>, vector<1x128xf32>,
    %c1_i32 = arith.constant 1 : i32
    %38 = arith.cmpi eq, %arg1, %c1_i32 : i32
    %39 = arith.extui %38 : i1 to i32
    %c0_i32_33 = arith.constant 0 : i32
    %40 = arith.cmpi ne, %39, %c0_i32_33 : i32
    scf.if %40 {
      %c0_34 = arith.constant 0 : index
      %c0_35 = arith.constant 0 : index
      %41 = vector.load %arg10[%c0_34, %c0_35] : memref<1x128xf32, #tpu.memory_space<vmem>>, vector<1x128xf32>
      %c0_36 = arith.constant 0 : index
      %c0_37 = arith.constant 0 : index
      %42 = vector.load %arg9[%c0_36, %c0_37] : memref<8x128xf32, #tpu.memory_space<vmem>>, vector<1x128xf32>
      tpu.vector_store %arg9[%c0_36, %c0_37], %41 {strides = array<i32>} : memref<8x128xf32, #tpu.memory_space<vmem>>, vector<1x128xf32>,
      %c0_38 = arith.constant 0 : index
      %c0_39 = arith.constant 0 : index
      %43 = vector.load %arg11[%c0_38, %c0_39] : memref<1x128xf32, #tpu.memory_space<vmem>>, vector<1x128xf32>
      %c1 = arith.constant 1 : index
      %c0_40 = arith.constant 0 : index
      %44 = vector.load %arg9[%c1, %c0_40] : memref<8x128xf32, #tpu.memory_space<vmem>>, vector<1x128xf32>
      tpu.vector_store %arg9[%c1, %c0_40], %43 {strides = array<i32>} : memref<8x128xf32, #tpu.memory_space<vmem>>, vector<1x128xf32>,
      %c0_41 = arith.constant 0 : index
      %c0_42 = arith.constant 0 : index
      %45 = vector.load %arg12[%c0_41, %c0_42] : memref<1x128xf32, #tpu.memory_space<vmem>>, vector<1x128xf32>
      %c2 = arith.constant 2 : index
      %c0_43 = arith.constant 0 : index
      %46 = vector.load %arg9[%c2, %c0_43] : memref<8x128xf32, #tpu.memory_space<vmem>>, vector<1x128xf32>
      tpu.vector_store %arg9[%c2, %c0_43], %45 {strides = array<i32>} : memref<8x128xf32, #tpu.memory_space<vmem>>, vector<1x128xf32>,
    } else {
    }
    return
  }
  func.func @transform_0(%arg0: i32, %arg1: i32) -> (i32, i32) {
    %c2_i32 = arith.constant 2 : i32
    %0 = arith.muli %arg0, %c2_i32 : i32
    %1 = arith.addi %0, %arg1 : i32
    %c0_i32 = arith.constant 0 : i32
    %c0_i32_0 = arith.constant 0 : i32
    return %1, %c0_i32 : i32, i32
  }
  func.func @transform_1(%arg0: i32, %arg1: i32) -> (i32, i32) {
    %c2_i32 = arith.constant 2 : i32
    %0 = arith.muli %arg0, %c2_i32 : i32
    %1 = arith.addi %0, %arg1 : i32
    %c0_i32 = arith.constant 0 : i32
    %c0_i32_0 = arith.constant 0 : i32
    return %1, %c0_i32 : i32, i32
  }
  func.func @transform_2(%arg0: i32, %arg1: i32) -> (i32, i32) {
    %c0_i32 = arith.constant 0 : i32
    %c0_i32_0 = arith.constant 0 : i32
    %c0_i32_1 = arith.constant 0 : i32
    return %c0_i32, %c0_i32_0 : i32, i32
  }
  func.func @transform_3(%arg0: i32, %arg1: i32) -> (i32, i32) {
    %c0_i32 = arith.constant 0 : i32
    %c0_i32_0 = arith.constant 0 : i32
    %c0_i32_1 = arith.constant 0 : i32
    return %c0_i32, %c0_i32_0 : i32, i32
  }
  func.func @transform_4(%arg0: i32, %arg1: i32) -> (i32, i32) {
    %c0_i32 = arith.constant 0 : i32
    %c0_i32_0 = arith.constant 0 : i32
    %c0_i32_1 = arith.constant 0 : i32
    return %c0_i32, %c0_i32_0 : i32, i32
  }
  func.func @transform_5(%arg0: i32, %arg1: i32) -> (i32, i32) {
    %c0_i32 = arith.constant 0 : i32
    %c0_i32_0 = arith.constant 0 : i32
    %c0_i32_1 = arith.constant 0 : i32
    return %c0_i32, %c0_i32_0 : i32, i32
  }
  func.func @transform_6(%arg0: i32, %arg1: i32) -> (i32, i32) {
    %c0_i32 = arith.constant 0 : i32
    %c0_i32_0 = arith.constant 0 : i32
    return %arg0, %c0_i32 : i32, i32
  }
  func.func @transform_7(%arg0: i32, %arg1: i32) -> (i32, i32) {
    %c0_i32 = arith.constant 0 : i32
    %c0_i32_0 = arith.constant 0 : i32
    return %arg0, %c0_i32 : i32, i32
  }
}

</mosaic_0001>

<llo_original>
// kernel: tpu_custom_call.1
$region0: #{tpu_custom_call.1}
  #allocation0 [shape = 'u32[]', space=smem, size = 0x4, offset = 0x4, fixed_abs, tag = 'smem constant byte address 0x4 - core index']
  #allocation1 [shape = 'u32[144,128]{1,0:T(1,128)}', space=vmem, size = 0x12000, scoped, tag = 'internal scratch']
  #allocation2 [shape = 'f32[1,128]{1,0:T(1,128)}', space=vmem, size = 0x200, scoped, tag = 'scratch operand']
  #allocation3 [shape = 'f32[1,128]{1,0:T(1,128)}', space=vmem, size = 0x200, scoped, tag = 'scratch operand']
  #allocation4 [shape = 'f32[1,128]{1,0:T(1,128)}', space=vmem, size = 0x200, scoped, tag = 'scratch operand']
  %s0 = inlined_call_operand.vmem [shape: f32[1024,64], index: 0, kind: input, shape index: {}]
  %s1 = inlined_call_operand.vmem [shape: f32[1024,64], index: 1, kind: input, shape index: {}]
  %s2 = inlined_call_operand.vmem [shape: f32[64,128], index: 2, kind: input, shape index: {}]
  %s3 = inlined_call_operand.vmem [shape: f32[1,128], index: 3, kind: input, shape index: {}]
  %s4 = inlined_call_operand.vmem [shape: f32[64,256], index: 4, kind: input, shape index: {}]
  %s5 = inlined_call_operand.vmem [shape: f32[1,256], index: 5, kind: input, shape index: {}]
  %s6 = inlined_call_operand.hbm [shape: f32[256,128], index: 6, kind: output, shape index: {0}]
  %s7 = inlined_call_operand.hbm [shape: f32[16,128], index: 7, kind: output, shape index: {1}]
  %8 = xla_tuple %s6, %s7
  %s9 = sld [smem:[#allocation0]]
  $region73: #{tpu_custom_call.1} parent=0
    _
  %s11 = ssub.s32 1, %s9
  %s12 = scalar_select 0, %s11, %s9
  $region1: #{tpu_custom_call.1} parent=0
    #allocation5 [shape = 'u8[131072]{0}', space=vmem, size = 0x20000, scoped, tag = 'output window, operand 0']
    #allocation6 [shape = 's32[2]{0}', space=sflag, size = 0x8, scoped, tag = 'scoped memory for tpu_custom_call.1']
    #allocation7 [shape = 'u8[8192]{0}', space=vmem, size = 0x2000, scoped, tag = 'output window, operand 1']
    #allocation8 [shape = 's32[2]{0}', space=sflag, size = 0x8, scoped, tag = 'scoped memory for tpu_custom_call.1']
    %13 = vsyncpa [#allocation6], 0
    %s14 = scalar_lea.sflag [#allocation6], 1
    %15 = vsyncpa %s14, 0
    %16 = vsyncpa [#allocation8], 0
    %s17 = scalar_lea.sflag [#allocation8], 1
    %18 = vsyncpa %s17, 0
    loop: start=0, step=1, limit=6
    $region2: #{tpu_custom_call.1} parent=1 // loop_pre_header
      _
    $region3: #{tpu_custom_call.1} parent=1 // loop_header
      %s20 = sphi 0, %s24
      %p21 = scmp.ge.s32.totalorder %s20, 6
      %s27 = sphi 0, %s39
      %s28 = sphi 0, %s35
      %s29 = sphi 0, %s27
      %s30 = sphi 0, %s28
      %s31 = sphi 0, %s29
      %s32 = sphi 0, %s30
      %s46 = sphi 0, %s48
      %s49 = sphi 0, %s46
      %s50 = sphi 0, %s49
      %s66 = sphi 0, %s50
      %s76 = sphi 0, %s78
      %s79 = sphi 0, %s76
      %s80 = sphi 0, %s79
      %s96 = sphi 0, %s80
      %s100 = sphi 0, %s100
      %s102 = sphi 0, %s100
      %s103 = sphi 0, %s102
      %s117 = sphi 0, %s103
      %s121 = sphi 0, %s121
      %s123 = sphi 0, %s121
      %s124 = sphi 0, %s123
      %s138 = sphi 0, %s124
      %s142 = sphi 0, %s142
      %s144 = sphi 0, %s142
      %s145 = sphi 0, %s144
      %s159 = sphi 0, %s145
      %s163 = sphi 0, %s163
      %s165 = sphi 0, %s163
      %s166 = sphi 0, %s165
      %s180 = sphi 0, %s166
      %s186 = sphi 0, %s188
      %s189 = sphi 0, %s186
      %s190 = sphi 0, %s189
      %s206 = sphi 0, %s190
      %s212 = sphi 0, %s214
      %s215 = sphi 0, %s212
      %s216 = sphi 0, %s215
      %s232 = sphi 0, %s216
    $region4: #{tpu_custom_call.1} parent=1 // loop_header_branch
      %23 = sbr.rel (%p21) target = $region8
    $region5: #{tpu_custom_call.1} parent=1 // loop_body
      %s25 = ssub.s32 %s20, 1
      %s26 = ssub.s32 %s20, 2
      %s33 = sadd.s32 1, %s28
      %p34 = scmp.ge.s32.totalorder %s33, 2
      %s35 = scalar_select %p34, 0, %s33
      %s36 = sadd.s32 1, %s27
      %s37 = scalar_select %p34, %s36, %s27
      %p38 = scmp.ge.s32.totalorder %s37, 2
      %s39 = scalar_select %p38, 0, %s37
      %s40 = smul.u32 %s27, 2
      %s41 = sadd.s32 %s40, %s28
      %s42 = smul.u32 %s39, 2
      %s43 = sadd.s32 %s42, %s35
      %s44 = ssub.s32 %s41, %s43
      %p45 = scmp.eq.s32.totalorder %s44, 0
      %s47 = sadd.s32 %s46, 1
      %s48 = scalar_select %p45, %s46, %s47
      %p51 = pneg %p45
      %p52 = scmp.eq.s32.totalorder %s20, 3
      %p53 = por %p51, %p52
      %p54 = scmp.ne.s32.totalorder %s46, %s49
      %p55 = scmp.eq.s32.totalorder %s20, 0
      %p56 = por %p54, %p55
      %p57 = scmp.ne.s32.totalorder %s46, %s49
      %p58 = scmp.eq.s32.totalorder %s25, 3
      %p59 = por %p57, %p58
      %p60 = scmp.ne.s32.totalorder %s49, %s50
      %p61 = scmp.eq.s32.totalorder %s25, 0
      %p62 = por %p60, %p61
      %p63 = scmp.ne.s32.totalorder %s49, %s50
      %p64 = scmp.eq.s32.totalorder %s26, 3
      %p65 = por %p63, %p64
      %p67 = scmp.ne.s32.totalorder %s50, %s66
      %p68 = scmp.eq.s32.totalorder %s26, 0
      %p69 = por %p67, %p68
      %s70 = smul.u32 %s27, 2
      %s71 = sadd.s32 %s70, %s28
      %s72 = smul.u32 %s39, 2
      %s73 = sadd.s32 %s72, %s35
      %s74 = ssub.s32 %s71, %s73
      %p75 = scmp.eq.s32.totalorder %s74, 0
      %s77 = sadd.s32 %s76, 1
      %s78 = scalar_select %p75, %s76, %s77
      %p81 = pneg %p75
      %p82 = scmp.eq.s32.totalorder %s20, 3
      %p83 = por %p81, %p82
      %p84 = scmp.ne.s32.totalorder %s76, %s79
      %p85 = scmp.eq.s32.totalorder %s20, 0
      %p86 = por %p84, %p85
      %p87 = scmp.ne.s32.totalorder %s76, %s79
      %p88 = scmp.eq.s32.totalorder %s25, 3
      %p89 = por %p87, %p88
      %p90 = scmp.ne.s32.totalorder %s79, %s80
      %p91 = scmp.eq.s32.totalorder %s25, 0
      %p92 = por %p90, %p91
      %p93 = scmp.ne.s32.totalorder %s79, %s80
      %p94 = scmp.eq.s32.totalorder %s26, 3
      %p95 = por %p93, %p94
      %p97 = scmp.ne.s32.totalorder %s80, %s96
      %p98 = scmp.eq.s32.totalorder %s26, 0
      %p99 = por %p97, %p98
      %s101 = sadd.s32 %s100, 1
      %p104 = scmp.eq.s32.totalorder %s20, 3
      %p105 = scmp.ne.s32.totalorder %s100, %s102
      %p106 = scmp.eq.s32.totalorder %s20, 0
      %p107 = por %p105, %p106
      %p108 = scmp.ne.s32.totalorder %s100, %s102
      %p109 = scmp.eq.s32.totalorder %s25, 3
      %p110 = por %p108, %p109
      %p111 = scmp.ne.s32.totalorder %s102, %s103
      %p112 = scmp.eq.s32.totalorder %s25, 0
      %p113 = por %p111, %p112
      %p114 = scmp.ne.s32.totalorder %s102, %s103
      %p115 = scmp.eq.s32.totalorder %s26, 3
      %p116 = por %p114, %p115
      %p118 = scmp.ne.s32.totalorder %s103, %s117
      %p119 = scmp.eq.s32.totalorder %s26, 0
      %p120 = por %p118, %p119
      %s122 = sadd.s32 %s121, 1
      %p125 = scmp.eq.s32.totalorder %s20, 3
      %p126 = scmp.ne.s32.totalorder %s121, %s123
      %p127 = scmp.eq.s32.totalorder %s20, 0
      %p128 = por %p126, %p127
      %p129 = scmp.ne.s32.totalorder %s121, %s123
      %p130 = scmp.eq.s32.totalorder %s25, 3
      %p131 = por %p129, %p130
      %p132 = scmp.ne.s32.totalorder %s123, %s124
      %p133 = scmp.eq.s32.totalorder %s25, 0
      %p134 = por %p132, %p133
      %p135 = scmp.ne.s32.totalorder %s123, %s124
      %p136 = scmp.eq.s32.totalorder %s26, 3
      %p137 = por %p135, %p136
      %p139 = scmp.ne.s32.totalorder %s124, %s138
      %p140 = scmp.eq.s32.totalorder %s26, 0
      %p141 = por %p139, %p140
      %s143 = sadd.s32 %s142, 1
      %p146 = scmp.eq.s32.totalorder %s20, 3
      %p147 = scmp.ne.s32.totalorder %s142, %s144
      %p148 = scmp.eq.s32.totalorder %s20, 0
      %p149 = por %p147, %p148
      %p150 = scmp.ne.s32.totalorder %s142, %s144
      %p151 = scmp.eq.s32.totalorder %s25, 3
      %p152 = por %p150, %p151
      %p153 = scmp.ne.s32.totalorder %s144, %s145
      %p154 = scmp.eq.s32.totalorder %s25, 0
      %p155 = por %p153, %p154
      %p156 = scmp.ne.s32.totalorder %s144, %s145
      %p157 = scmp.eq.s32.totalorder %s26, 3
      %p158 = por %p156, %p157
      %p160 = scmp.ne.s32.totalorder %s145, %s159
      %p161 = scmp.eq.s32.totalorder %s26, 0
      %p162 = por %p160, %p161
      %s164 = sadd.s32 %s163, 1
      %p167 = scmp.eq.s32.totalorder %s20, 3
      %p168 = scmp.ne.s32.totalorder %s163, %s165
      %p169 = scmp.eq.s32.totalorder %s20, 0
      %p170 = por %p168, %p169
      %p171 = scmp.ne.s32.totalorder %s163, %s165
      %p172 = scmp.eq.s32.totalorder %s25, 3
      %p173 = por %p171, %p172
      %p174 = scmp.ne.s32.totalorder %s165, %s166
      %p175 = scmp.eq.s32.totalorder %s25, 0
      %p176 = por %p174, %p175
      %p177 = scmp.ne.s32.totalorder %s165, %s166
      %p178 = scmp.eq.s32.totalorder %s26, 3
      %p179 = por %p177, %p178
      %p181 = scmp.ne.s32.totalorder %s166, %s180
      %p182 = scmp.eq.s32.totalorder %s26, 0
      %p183 = por %p181, %p182
      %s184 = ssub.s32 %s27, %s39
      %p185 = scmp.eq.s32.totalorder %s184, 0
      %s187 = sadd.s32 %s186, 1
      %s188 = scalar_select %p185, %s186, %s187
      %p191 = pneg %p185
      %p192 = scmp.eq.s32.totalorder %s20, 3
      %p193 = por %p191, %p192
      %p194 = scmp.ne.s32.totalorder %s186, %s189
      %p195 = scmp.eq.s32.totalorder %s20, 0
      %p196 = por %p194, %p195
      %p197 = scmp.ne.s32.totalorder %s186, %s189
      %p198 = scmp.eq.s32.totalorder %s25, 3
      %p199 = por %p197, %p198
      %p200 = scmp.ne.s32.totalorder %s189, %s190
      %p201 = scmp.eq.s32.totalorder %s25, 0
      %p202 = por %p200, %p201
      %p203 = scmp.ne.s32.totalorder %s189, %s190
      %p204 = scmp.eq.s32.totalorder %s26, 3
      %p205 = por %p203, %p204
      %p207 = scmp.ne.s32.totalorder %s190, %s206
      %p208 = scmp.eq.s32.totalorder %s26, 0
      %p209 = por %p207, %p208
      %s210 = ssub.s32 %s27, %s39
      %p211 = scmp.eq.s32.totalorder %s210, 0
      %s213 = sadd.s32 %s212, 1
      %s214 = scalar_select %p211, %s212, %s213
      %p217 = pneg %p211
      %p218 = scmp.eq.s32.totalorder %s20, 3
      %p219 = por %p217, %p218
      %p220 = scmp.ne.s32.totalorder %s212, %s215
      %p221 = scmp.eq.s32.totalorder %s20, 0
      %p222 = por %p220, %p221
      %p223 = scmp.ne.s32.totalorder %s212, %s215
      %p224 = scmp.eq.s32.totalorder %s25, 3
      %p225 = por %p223, %p224
      %p226 = scmp.ne.s32.totalorder %s215, %s216
      %p227 = scmp.eq.s32.totalorder %s25, 0
      %p228 = por %p226, %p227
      %p229 = scmp.ne.s32.totalorder %s215, %s216
      %p230 = scmp.eq.s32.totalorder %s26, 3
      %p231 = por %p229, %p230
      %p233 = scmp.ne.s32.totalorder %s216, %s232
      %p234 = scmp.eq.s32.totalorder %s26, 0
      %p235 = por %p233, %p234
      %p236 = scmp.le.s32.totalorder 1, %s20
      %p237 = scmp.lt.s32.totalorder %s20, 5
      %p238 = pnand %p236, %p237
      %p239 = pneg %p238
      // Predicated region
      $region9: #{tpu_custom_call.1} parent=5 // pred_check
        _
      $region10: #{tpu_custom_call.1} parent=5 // pred_check_branch
        %241 = sbr.rel (%p238) target = $region12
      $region11: #{tpu_custom_call.1} parent=5 // pred_region
        %s242 = ssub.s32 %s20, 1
        // Predicated region
        $region13: #{tpu_custom_call.1} parent=11 // pred_check
          %p243 = pneg %p113
        $region14: #{tpu_custom_call.1} parent=11 // pred_check_branch
          %245 = sbr.rel (%p243) target = $region16
        $region15: #{tpu_custom_call.1} parent=11 // pred_region
          _
        $region16: #{tpu_custom_call.1} parent=11 // pred_fallthru
          _
        // Predicated region
        $region17: #{tpu_custom_call.1} parent=11 // pred_check
          %p246 = pneg %p134
        $region18: #{tpu_custom_call.1} parent=11 // pred_check_branch
          %248 = sbr.rel (%p246) target = $region20
        $region19: #{tpu_custom_call.1} parent=11 // pred_region
          _
        $region20: #{tpu_custom_call.1} parent=11 // pred_fallthru
          _
        // Predicated region
        $region21: #{tpu_custom_call.1} parent=11 // pred_check
          %p249 = pneg %p155
        $region22: #{tpu_custom_call.1} parent=11 // pred_check_branch
          %251 = sbr.rel (%p249) target = $region24
        $region23: #{tpu_custom_call.1} parent=11 // pred_region
          _
        $region24: #{tpu_custom_call.1} parent=11 // pred_fallthru
          _
        // Predicated region
        $region25: #{tpu_custom_call.1} parent=11 // pred_check
          %p252 = pneg %p176
        $region26: #{tpu_custom_call.1} parent=11 // pred_check_branch
          %254 = sbr.rel (%p252) target = $region28
        $region27: #{tpu_custom_call.1} parent=11 // pred_region
          _
        $region28: #{tpu_custom_call.1} parent=11 // pred_fallthru
          _
      $region12: #{tpu_custom_call.1} parent=5 // pred_fallthru
        _
      %p255 = scmp.lt.s32.totalorder %s20, 4
      // Predicated region
      $region29: #{tpu_custom_call.1} parent=5 // pred_check
        %p256 = pneg %p255
      $region30: #{tpu_custom_call.1} parent=5 // pred_check_branch
        %258 = sbr.rel (%p256) target = $region32
      $region31: #{tpu_custom_call.1} parent=5 // pred_region
        // Predicated region
        $region33: #{tpu_custom_call.1} parent=31 // pred_check
          %p259 = pneg %p56
        $region34: #{tpu_custom_call.1} parent=31 // pred_check_branch
          %261 = sbr.rel (%p259) target = $region36
        $region35: #{tpu_custom_call.1} parent=31 // pred_region
          %s262 = smul.u32 %s27, 2
          %s263 = sadd.s32 %s262, %s28
          %s264 = smul.u32 32, %s263
          %p265 = scmp.lt.s32.totalorder %s264, 127
          %s266 = scalar_select %p265, %s264, 127
          %s267 = smul.addr %s266, 8
          %s268 = scalar_lea.vmem %s0, %s267
          %s269 = smul.u32 %s27, 2
          %s270 = sadd.s32 %s269, %s28
          %s271 = smul.u32 32, %s270
        $region36: #{tpu_custom_call.1} parent=31 // pred_fallthru
          _
        // Predicated region
        $region37: #{tpu_custom_call.1} parent=31 // pred_check
          %p272 = pneg %p86
        $region38: #{tpu_custom_call.1} parent=31 // pred_check_branch
          %274 = sbr.rel (%p272) target = $region40
        $region39: #{tpu_custom_call.1} parent=31 // pred_region
          %s275 = smul.u32 %s27, 2
          %s276 = sadd.s32 %s275, %s28
          %s277 = smul.u32 32, %s276
          %p278 = scmp.lt.s32.totalorder %s277, 127
          %s279 = scalar_select %p278, %s277, 127
          %s280 = smul.addr %s279, 8
          %s281 = scalar_lea.vmem %s1, %s280
          %s282 = smul.u32 %s27, 2
          %s283 = sadd.s32 %s282, %s28
          %s284 = smul.u32 32, %s283
        $region40: #{tpu_custom_call.1} parent=31 // pred_fallthru
          _
      $region32: #{tpu_custom_call.1} parent=5 // pred_fallthru
        _
      %p285 = scmp.le.s32.totalorder 1, %s20
      %p286 = scmp.lt.s32.totalorder %s20, 5
      %p287 = pnand %p285, %p286
      %p288 = pneg %p287
      // Predicated region
      $region41: #{tpu_custom_call.1} parent=5 // pred_check
        _
      $region42: #{tpu_custom_call.1} parent=5 // pred_check_branch
        %290 = sbr.rel (%p287) target = $region44
      $region43: #{tpu_custom_call.1} parent=5 // pred_region
        %s291 = ssub.s32 %s20, 1
        %s292 = smul.u32 %s29, 2
        %s293 = sadd.s32 %s292, %s30
        %s294 = smul.u32 32, %s293
        %p295 = scmp.lt.s32.totalorder %s294, 127
        %s296 = scalar_select %p295, %s294, 127
        %s297 = smul.addr %s296, 8
        %s298 = scalar_lea.vmem %s0, %s297
        %p299 = pneg %p62
        %p300 = pneg %p59
        %s301 = smul.u32 %s29, 2
        %s302 = sadd.s32 %s301, %s30
        %s303 = smul.u32 32, %s302
        %p304 = scmp.lt.s32.totalorder %s303, 127
        %s305 = scalar_select %p304, %s303, 127
        %s306 = smul.addr %s305, 8
        %s307 = scalar_lea.vmem %s1, %s306
        %p308 = pneg %p92
        %p309 = pneg %p89
        %p310 = pneg %p113
        %p311 = pneg %p110
        %p312 = pneg %p134
        %p313 = pneg %p131
        %p314 = pneg %p155
        %p315 = pneg %p152
        %p316 = pneg %p176
        %p317 = pneg %p173
        %p318 = pneg %p202
        %p319 = pneg %p199
        %s320 = sand.u32 %s189, 1
        %s321 = scalar_lea.sflag [#allocation6], %s320
        %s322 = sand.u32 %s189, 1
        %s323 = smul.addr %s322, 128
        %s324 = scalar_lea.vmem [#allocation5], %s323
        %p325 = pneg %p228
        %p326 = pneg %p225
        %s327 = sand.u32 %s215, 1
        %s328 = scalar_lea.sflag [#allocation8], %s327
        %s329 = sand.u32 %s215, 1
        %s330 = smul.addr %s329, 8
        %s331 = scalar_lea.vmem [#allocation7], %s330
        %s332 = smul.u32 %s29, 2
        %s333 = sadd.s32 %s332, %s30
        %s334 = smul.u32 32, %s333
        %p335 = scmp.lt.s32.totalorder %s334, 127
        %s336 = scalar_select %p335, %s334, 127
        %s337 = smul.addr %s336, 8
        %s338 = scalar_lea.vmem %s0, %s337
        %s339 = smul.u32 %s29, 2
        %s340 = sadd.s32 %s339, %s30
        %s341 = smul.u32 32, %s340
        %s342 = smul.u32 %s29, 2
        %s343 = sadd.s32 %s342, %s30
        %s344 = smul.u32 32, %s343
        %p345 = scmp.lt.s32.totalorder %s344, 127
        %s346 = scalar_select %p345, %s344, 127
        %s347 = smul.addr %s346, 8
        %s348 = scalar_lea.vmem %s1, %s347
        %s349 = smul.u32 %s29, 2
        %s350 = sadd.s32 %s349, %s30
        %s351 = smul.u32 32, %s350
        %s352 = smul.u32 16, %s29
        %v353 = vld [vmem:[%s338] sm:$0xff]
        %v354 = vld [vmem:[%s338 + $0x8] sm:$0xff]
        %v355 = vld [vmem:[%s338 + $0x10] sm:$0xff]
        %v356 = vld [vmem:[%s338 + $0x18] sm:$0xff]
        %v357 = vld [vmem:[%s338 + $0x20] sm:$0xff]
        %v358 = vld [vmem:[%s338 + $0x28] sm:$0xff]
        %v359 = vld [vmem:[%s338 + $0x30] sm:$0xff]
        %v360 = vld [vmem:[%s338 + $0x38] sm:$0xff]
        %v361 = vld [vmem:[%s338 + $0x40] sm:$0xff]
        %v362 = vld [vmem:[%s338 + $0x48] sm:$0xff]
        %v363 = vld [vmem:[%s338 + $0x50] sm:$0xff]
        %v364 = vld [vmem:[%s338 + $0x58] sm:$0xff]
        %v365 = vld [vmem:[%s338 + $0x60] sm:$0xff]
        %v366 = vld [vmem:[%s338 + $0x68] sm:$0xff]
        %v367 = vld [vmem:[%s338 + $0x70] sm:$0xff]
        %v368 = vld [vmem:[%s338 + $0x78] sm:$0xff]
        %v369 = vld [vmem:[%s338 + $0x80] sm:$0xff]
        %v370 = vld [vmem:[%s338 + $0x88] sm:$0xff]
        %v371 = vld [vmem:[%s338 + $0x90] sm:$0xff]
        %v372 = vld [vmem:[%s338 + $0x98] sm:$0xff]
        %v373 = vld [vmem:[%s338 + $0xa0] sm:$0xff]
        %v374 = vld [vmem:[%s338 + $0xa8] sm:$0xff]
        %v375 = vld [vmem:[%s338 + $0xb0] sm:$0xff]
        %v376 = vld [vmem:[%s338 + $0xb8] sm:$0xff]
        %v377 = vld [vmem:[%s338 + $0xc0] sm:$0xff]
        %v378 = vld [vmem:[%s338 + $0xc8] sm:$0xff]
        %v379 = vld [vmem:[%s338 + $0xd0] sm:$0xff]
        %v380 = vld [vmem:[%s338 + $0xd8] sm:$0xff]
        %v381 = vld [vmem:[%s338 + $0xe0] sm:$0xff]
        %v382 = vld [vmem:[%s338 + $0xe8] sm:$0xff]
        %v383 = vld [vmem:[%s338 + $0xf0] sm:$0xff]
        %v384 = vld [vmem:[%s338 + $0xf8] sm:$0xff]
        %v385 = vld [vmem:[%s2] sm:$0xff]
        %v386 = vld [vmem:[%s2 + $0x8] sm:$0xff]
        %v387 = vld [vmem:[%s2 + $0x10] sm:$0xff]
        %v388 = vld [vmem:[%s2 + $0x18] sm:$0xff]
        %v389 = vld [vmem:[%s2 + $0x20] sm:$0xff]
        %v390 = vld [vmem:[%s2 + $0x28] sm:$0xff]
        %v391 = vld [vmem:[%s2 + $0x30] sm:$0xff]
        %v392 = vld [vmem:[%s2 + $0x38] sm:$0xff]
        %v393 = vld [vmem:[%s3] sm:$0x1]
        %v395 = vlaneseq
        %v396 = vshrl.u32 %v395, 7
        %v397 = vsub.s32 0, %v396
        %v398 = vrot.slane %v393, %v397
        %vm400 = vcmask 523264
        %v402 = vsel %vm400, %v353, 0
        %v405 = vsel %vm400, %v354, 0
        %v408 = vsel %vm400, %v355, 0
        %v411 = vsel %vm400, %v356, 0
        %v414 = vsel %vm400, %v357, 0
        %v417 = vsel %vm400, %v358, 0
        %v420 = vsel %vm400, %v359, 0
        %v423 = vsel %vm400, %v360, 0
        %v426 = vsel %vm400, %v361, 0
        %v429 = vsel %vm400, %v362, 0
        %v432 = vsel %vm400, %v363, 0
        %v435 = vsel %vm400, %v364, 0
        %v438 = vsel %vm400, %v365, 0
        %v441 = vsel %vm400, %v366, 0
        %v444 = vsel %vm400, %v367, 0
        %v447 = vsel %vm400, %v368, 0
        %v450 = vsel %vm400, %v369, 0
        %v453 = vsel %vm400, %v370, 0
        %v456 = vsel %vm400, %v371, 0
        %v459 = vsel %vm400, %v372, 0
        %v462 = vsel %vm400, %v373, 0
        %v465 = vsel %vm400, %v374, 0
        %v468 = vsel %vm400, %v375, 0
        %v471 = vsel %vm400, %v376, 0
        %v474 = vsel %vm400, %v377, 0
        %v477 = vsel %vm400, %v378, 0
        %v480 = vsel %vm400, %v379, 0
        %v483 = vsel %vm400, %v380, 0
        %v486 = vsel %vm400, %v381, 0
        %v489 = vsel %vm400, %v382, 0
        %v492 = vsel %vm400, %v383, 0
        %v495 = vsel %vm400, %v384, 0
        %497 = vmatprep.subr.mxu0 0.0
        %498 = vmatpush1.msra.mxu0 0.0
        %499 = vmatprep.subr.mxu0 0.0
        %500 = vmatpush1.msra.mxu0 0.0
        %501 = vmatprep.subr.mxu0 0.0
        %502 = vmatpush1.msra.mxu0 0.0
        %503 = vmatprep.subr.mxu0 0.0
        %504 = vmatpush1.msra.mxu0 0.0
        %505 = vmatprep.subr.mxu0 0.0
        %506 = vmatpush1.msra.mxu0 0.0
        %507 = vmatprep.subr.mxu0 0.0
        %508 = vmatpush1.msra.mxu0 0.0
        %509 = vmatprep.subr.mxu0 0.0
        %510 = vmatpush1.msra.mxu0 0.0
        %511 = vmatprep.subr.mxu0 0.0
        %512 = vmatpush1.msra.mxu0 0.0
        %513 = vmatprep.subr.mxu0 0.0
        %514 = vmatpush1.msra.mxu0 %v392
        %515 = vmatprep.subr.mxu0 0.0
        %516 = vmatpush1.msra.mxu0 %v391
        %517 = vmatprep.subr.mxu0 0.0
        %518 = vmatpush1.msra.mxu0 %v390
        %519 = vmatprep.subr.mxu0 0.0
        %520 = vmatpush1.msra.mxu0 %v389
        %521 = vmatprep.subr.mxu0 0.0
        %522 = vmatpush1.msra.mxu0 %v388
        %523 = vmatprep.subr.mxu0 0.0
        %524 = vmatpush1.msra.mxu0 %v387
        %525 = vmatprep.subr.mxu0 0.0
        %526 = vmatpush1.msra.mxu0 %v386
        %527 = vmatprep.subr.mxu0 0.0
        %528 = vmatpush1.msra.mxu0 %v385
        %529 = vmatprep.subr.mxu0 0.0
        %530 = vmatpush2.msra.mxu0 0.0
        %531 = vmatprep.subr.mxu0 0.0
        %532 = vmatpush2.msra.mxu0 0.0
        %533 = vmatprep.subr.mxu0 0.0
        %534 = vmatpush2.msra.mxu0 0.0
        %535 = vmatprep.subr.mxu0 0.0
        %536 = vmatpush2.msra.mxu0 0.0
        %537 = vmatprep.subr.mxu0 0.0
        %538 = vmatpush2.msra.mxu0 0.0
        %539 = vmatprep.subr.mxu0 0.0
        %540 = vmatpush2.msra.mxu0 0.0
        %541 = vmatprep.subr.mxu0 0.0
        %542 = vmatpush2.msra.mxu0 0.0
        %543 = vmatprep.subr.mxu0 0.0
        %544 = vmatpush2.msra.mxu0 0.0
        %545 = vmatprep.subr.mxu0 0.0
        %546 = vmatpush2.msra.mxu0 0.0
        %547 = vmatprep.subr.mxu0 0.0
        %548 = vmatpush2.msra.mxu0 0.0
        %549 = vmatprep.subr.mxu0 0.0
        %550 = vmatpush2.msra.mxu0 0.0
        %551 = vmatprep.subr.mxu0 0.0
        %552 = vmatpush2.msra.mxu0 0.0
        %553 = vmatprep.subr.mxu0 0.0
        %554 = vmatpush2.msra.mxu0 0.0
        %555 = vmatprep.subr.mxu0 0.0
        %556 = vmatpush2.msra.mxu0 0.0
        %557 = vmatprep.subr.mxu0 0.0
        %558 = vmatpush2.msra.mxu0 0.0
        %559 = vmatprep.subr.mxu0 0.0
        %560 = vmatpush2.msra.mxu0 0.0
        %561 = vmatprep.mubr.f32.mxu0 0.0
        %562 = vmatmul.mubr.f32.gmra.mxu0 %v402
        %v563 = vpop.f32.mrf.mxu0
        %v564 = vadd.f32 %v398, %v563
        %v565 = vpop.f32.mrf.mxu0
        %566 = vmatprep.mubr.f32.mxu0 0.0
        %567 = vmatmul.mubr.f32.gmra.mxu0 %v405
        %v568 = vpop.f32.mrf.mxu0
        %v569 = vadd.f32 %v398, %v568
        %v570 = vpop.f32.mrf.mxu0
        %571 = vmatprep.mubr.f32.mxu0 0.0
        %572 = vmatmul.mubr.f32.gmra.mxu0 %v408
        %v573 = vpop.f32.mrf.mxu0
        %v574 = vadd.f32 %v398, %v573
        %v575 = vpop.f32.mrf.mxu0
        %576 = vmatprep.mubr.f32.mxu0 0.0
        %577 = vmatmul.mubr.f32.gmra.mxu0 %v411
        %v578 = vpop.f32.mrf.mxu0
        %v579 = vadd.f32 %v398, %v578
        %v580 = vpop.f32.mrf.mxu0
        %581 = vmatprep.mubr.f32.mxu0 0.0
        %582 = vmatmul.mubr.f32.gmra.mxu0 %v414
        %v583 = vpop.f32.mrf.mxu0
        %v584 = vadd.f32 %v398, %v583
        %v585 = vpop.f32.mrf.mxu0
        %586 = vmatprep.mubr.f32.mxu0 0.0
        %587 = vmatmul.mubr.f32.gmra.mxu0 %v417
        %v588 = vpop.f32.mrf.mxu0
        %v589 = vadd.f32 %v398, %v588
        %v590 = vpop.f32.mrf.mxu0
        %591 = vmatprep.mubr.f32.mxu0 0.0
        %592 = vmatmul.mubr.f32.gmra.mxu0 %v420
        %v593 = vpop.f32.mrf.mxu0
        %v594 = vadd.f32 %v398, %v593
        %v595 = vpop.f32.mrf.mxu0
        %596 = vmatprep.mubr.f32.mxu0 0.0
        %597 = vmatmul.mubr.f32.gmra.mxu0 %v423
        %v598 = vpop.f32.mrf.mxu0
        %v599 = vadd.f32 %v398, %v598
        %v600 = vpop.f32.mrf.mxu0
        %601 = vmatprep.mubr.f32.mxu0 0.0
        %602 = vmatmul.mubr.f32.gmra.mxu0 %v426
        %v603 = vpop.f32.mrf.mxu0
        %v604 = vadd.f32 %v398, %v603
        %v605 = vpop.f32.mrf.mxu0
        %606 = vmatprep.mubr.f32.mxu0 0.0
        %607 = vmatmul.mubr.f32.gmra.mxu0 %v429
        %v608 = vpop.f32.mrf.mxu0
        %v609 = vadd.f32 %v398, %v608
        %v610 = vpop.f32.mrf.mxu0
        %611 = vmatprep.mubr.f32.mxu0 0.0
        %612 = vmatmul.mubr.f32.gmra.mxu0 %v432
        %v613 = vpop.f32.mrf.mxu0
        %v614 = vadd.f32 %v398, %v613
        %v615 = vpop.f32.mrf.mxu0
        %616 = vmatprep.mubr.f32.mxu0 0.0
        %617 = vmatmul.mubr.f32.gmra.mxu0 %v435
        %v618 = vpop.f32.mrf.mxu0
        %v619 = vadd.f32 %v398, %v618
        %v620 = vpop.f32.mrf.mxu0
        %621 = vmatprep.mubr.f32.mxu0 0.0
        %622 = vmatmul.mubr.f32.gmra.mxu0 %v438
        %v623 = vpop.f32.mrf.mxu0
        %v624 = vadd.f32 %v398, %v623
        %v625 = vpop.f32.mrf.mxu0
        %626 = vmatprep.mubr.f32.mxu0 0.0
        %627 = vmatmul.mubr.f32.gmra.mxu0 %v441
        %v628 = vpop.f32.mrf.mxu0
        %v629 = vadd.f32 %v398, %v628
        %v630 = vpop.f32.mrf.mxu0
        %631 = vmatprep.mubr.f32.mxu0 0.0
        %632 = vmatmul.mubr.f32.gmra.mxu0 %v444
        %v633 = vpop.f32.mrf.mxu0
        %v634 = vadd.f32 %v398, %v633
        %v635 = vpop.f32.mrf.mxu0
        %636 = vmatprep.mubr.f32.mxu0 0.0
        %637 = vmatmul.mubr.f32.gmra.mxu0 %v447
        %v638 = vpop.f32.mrf.mxu0
        %v639 = vadd.f32 %v398, %v638
        %v640 = vpop.f32.mrf.mxu0
        %641 = vmatprep.mubr.f32.mxu0 0.0
        %642 = vmatmul.mubr.f32.gmra.mxu0 %v450
        %v643 = vpop.f32.mrf.mxu0
        %v644 = vadd.f32 %v398, %v643
        %v645 = vpop.f32.mrf.mxu0
        %646 = vmatprep.mubr.f32.mxu0 0.0
        %647 = vmatmul.mubr.f32.gmra.mxu0 %v453
        %v648 = vpop.f32.mrf.mxu0
        %v649 = vadd.f32 %v398, %v648
        %v650 = vpop.f32.mrf.mxu0
        %651 = vmatprep.mubr.f32.mxu0 0.0
        %652 = vmatmul.mubr.f32.gmra.mxu0 %v456
        %v653 = vpop.f32.mrf.mxu0
        %v654 = vadd.f32 %v398, %v653
        %v655 = vpop.f32.mrf.mxu0
        %656 = vmatprep.mubr.f32.mxu0 0.0
        %657 = vmatmul.mubr.f32.gmra.mxu0 %v459
        %v658 = vpop.f32.mrf.mxu0
        %v659 = vadd.f32 %v398, %v658
        %v660 = vpop.f32.mrf.mxu0
        %661 = vmatprep.mubr.f32.mxu0 0.0
        %662 = vmatmul.mubr.f32.gmra.mxu0 %v462
        %v663 = vpop.f32.mrf.mxu0
        %v664 = vadd.f32 %v398, %v663
        %v665 = vpop.f32.mrf.mxu0
        %666 = vmatprep.mubr.f32.mxu0 0.0
        %667 = vmatmul.mubr.f32.gmra.mxu0 %v465
        %v668 = vpop.f32.mrf.mxu0
        %v669 = vadd.f32 %v398, %v668
        %v670 = vpop.f32.mrf.mxu0
        %671 = vmatprep.mubr.f32.mxu0 0.0
        %672 = vmatmul.mubr.f32.gmra.mxu0 %v468
        %v673 = vpop.f32.mrf.mxu0
        %v674 = vadd.f32 %v398, %v673
        %v675 = vpop.f32.mrf.mxu0
        %676 = vmatprep.mubr.f32.mxu0 0.0
        %677 = vmatmul.mubr.f32.gmra.mxu0 %v471
        %v678 = vpop.f32.mrf.mxu0
        %v679 = vadd.f32 %v398, %v678
        %v680 = vpop.f32.mrf.mxu0
        %681 = vmatprep.mubr.f32.mxu0 0.0
        %682 = vmatmul.mubr.f32.gmra.mxu0 %v474
        %v683 = vpop.f32.mrf.mxu0
        %v684 = vadd.f32 %v398, %v683
        %v685 = vpop.f32.mrf.mxu0
        %686 = vmatprep.mubr.f32.mxu0 0.0
        %687 = vmatmul.mubr.f32.gmra.mxu0 %v477
        %v688 = vpop.f32.mrf.mxu0
        %v689 = vadd.f32 %v398, %v688
        %v690 = vpop.f32.mrf.mxu0
        %691 = vmatprep.mubr.f32.mxu0 0.0
        %692 = vmatmul.mubr.f32.gmra.mxu0 %v480
        %v693 = vpop.f32.mrf.mxu0
        %v694 = vadd.f32 %v398, %v693
        %v695 = vpop.f32.mrf.mxu0
        %696 = vmatprep.mubr.f32.mxu0 0.0
        %697 = vmatmul.mubr.f32.gmra.mxu0 %v483
        %v698 = vpop.f32.mrf.mxu0
        %v699 = vadd.f32 %v398, %v698
        %v700 = vpop.f32.mrf.mxu0
        %701 = vmatprep.mubr.f32.mxu0 0.0
        %702 = vmatmul.mubr.f32.gmra.mxu0 %v486
        %v703 = vpop.f32.mrf.mxu0
        %v704 = vadd.f32 %v398, %v703
        %v705 = vpop.f32.mrf.mxu0
        %706 = vmatprep.mubr.f32.mxu0 0.0
        %707 = vmatmul.mubr.f32.gmra.mxu0 %v489
        %v708 = vpop.f32.mrf.mxu0
        %v709 = vadd.f32 %v398, %v708
        %v710 = vpop.f32.mrf.mxu0
        %711 = vmatprep.mubr.f32.mxu0 0.0
        %712 = vmatmul.mubr.f32.gmra.mxu0 %v492
        %v713 = vpop.f32.mrf.mxu0
        %v714 = vadd.f32 %v398, %v713
        %v715 = vpop.f32.mrf.mxu0
        %716 = vmatprep.mubr.f32.mxu0 0.0
        %717 = vmatmul.mubr.f32.gmra.mxu0 %v495
        %v718 = vpop.f32.mrf.mxu0
        %v719 = vadd.f32 %v398, %v718
        %v720 = vpop.f32.mrf.mxu0
        %721 = vdwg.mxu0
        %v722 = vld [vmem:[%s348] sm:$0xff]
        %v723 = vld [vmem:[%s348 + $0x8] sm:$0xff]
        %v724 = vld [vmem:[%s348 + $0x10] sm:$0xff]
        %v725 = vld [vmem:[%s348 + $0x18] sm:$0xff]
        %v726 = vld [vmem:[%s348 + $0x20] sm:$0xff]
        %v727 = vld [vmem:[%s348 + $0x28] sm:$0xff]
        %v728 = vld [vmem:[%s348 + $0x30] sm:$0xff]
        %v729 = vld [vmem:[%s348 + $0x38] sm:$0xff]
        %v730 = vld [vmem:[%s348 + $0x40] sm:$0xff]
        %v731 = vld [vmem:[%s348 + $0x48] sm:$0xff]
        %v732 = vld [vmem:[%s348 + $0x50] sm:$0xff]
        %v733 = vld [vmem:[%s348 + $0x58] sm:$0xff]
        %v734 = vld [vmem:[%s348 + $0x60] sm:$0xff]
        %v735 = vld [vmem:[%s348 + $0x68] sm:$0xff]
        %v736 = vld [vmem:[%s348 + $0x70] sm:$0xff]
        %v737 = vld [vmem:[%s348 + $0x78] sm:$0xff]
        %v738 = vld [vmem:[%s348 + $0x80] sm:$0xff]
        %v739 = vld [vmem:[%s348 + $0x88] sm:$0xff]
        %v740 = vld [vmem:[%s348 + $0x90] sm:$0xff]
        %v741 = vld [vmem:[%s348 + $0x98] sm:$0xff]
        %v742 = vld [vmem:[%s348 + $0xa0] sm:$0xff]
        %v743 = vld [vmem:[%s348 + $0xa8] sm:$0xff]
        %v744 = vld [vmem:[%s348 + $0xb0] sm:$0xff]
        %v745 = vld [vmem:[%s348 + $0xb8] sm:$0xff]
        %v746 = vld [vmem:[%s348 + $0xc0] sm:$0xff]
        %v747 = vld [vmem:[%s348 + $0xc8] sm:$0xff]
        %v748 = vld [vmem:[%s348 + $0xd0] sm:$0xff]
        %v749 = vld [vmem:[%s348 + $0xd8] sm:$0xff]
        %v750 = vld [vmem:[%s348 + $0xe0] sm:$0xff]
        %v751 = vld [vmem:[%s348 + $0xe8] sm:$0xff]
        %v752 = vld [vmem:[%s348 + $0xf0] sm:$0xff]
        %v753 = vld [vmem:[%s348 + $0xf8] sm:$0xff]
        %v754 = vld [vmem:[%s4] sm:$0xff]
        %v755 = vld [vmem:[%s4 + $0x8] sm:$0xff]
        %v756 = vld [vmem:[%s4 + $0x10] sm:$0xff]
        %v757 = vld [vmem:[%s4 + $0x18] sm:$0xff]
        %v758 = vld [vmem:[%s4 + $0x20] sm:$0xff]
        %v759 = vld [vmem:[%s4 + $0x28] sm:$0xff]
        %v760 = vld [vmem:[%s4 + $0x30] sm:$0xff]
        %v761 = vld [vmem:[%s4 + $0x38] sm:$0xff]
        %v762 = vld [vmem:[%s4 + $0x40] sm:$0xff]
        %v763 = vld [vmem:[%s4 + $0x48] sm:$0xff]
        %v764 = vld [vmem:[%s4 + $0x50] sm:$0xff]
        %v765 = vld [vmem:[%s4 + $0x58] sm:$0xff]
        %v766 = vld [vmem:[%s4 + $0x60] sm:$0xff]
        %v767 = vld [vmem:[%s4 + $0x68] sm:$0xff]
        %v768 = vld [vmem:[%s4 + $0x70] sm:$0xff]
        %v769 = vld [vmem:[%s4 + $0x78] sm:$0xff]
        %v770 = vld [vmem:[%s5] sm:$0x3]
        %v772 = vlaneseq
        %v773 = vshrl.u32 %v772, 7
        %v774 = vsub.s32 0, %v773
        %v775 = vrot.slane %v770, %v774
        %v776 = vlaneseq
        %v777 = vshrl.u32 %v776, 7
        %v778 = vsub.s32 1, %v777
        %v779 = vrot.slane %v770, %v778
        %v783 = vsel %vm400, %v722, 0
        %v786 = vsel %vm400, %v723, 0
        %v789 = vsel %vm400, %v724, 0
        %v792 = vsel %vm400, %v725, 0
        %v795 = vsel %vm400, %v726, 0
        %v798 = vsel %vm400, %v727, 0
        %v801 = vsel %vm400, %v728, 0
        %v804 = vsel %vm400, %v729, 0
        %v807 = vsel %vm400, %v730, 0
        %v810 = vsel %vm400, %v731, 0
        %v813 = vsel %vm400, %v732, 0
        %v816 = vsel %vm400, %v733, 0
        %v819 = vsel %vm400, %v734, 0
        %v822 = vsel %vm400, %v735, 0
        %v825 = vsel %vm400, %v736, 0
        %v828 = vsel %vm400, %v737, 0
        %v831 = vsel %vm400, %v738, 0
        %v834 = vsel %vm400, %v739, 0
        %v837 = vsel %vm400, %v740, 0
        %v840 = vsel %vm400, %v741, 0
        %v843 = vsel %vm400, %v742, 0
        %v846 = vsel %vm400, %v743, 0
        %v849 = vsel %vm400, %v744, 0
        %v852 = vsel %vm400, %v745, 0
        %v855 = vsel %vm400, %v746, 0
        %v858 = vsel %vm400, %v747, 0
        %v861 = vsel %vm400, %v748, 0
        %v864 = vsel %vm400, %v749, 0
        %v867 = vsel %vm400, %v750, 0
        %v870 = vsel %vm400, %v751, 0
        %v873 = vsel %vm400, %v752, 0
        %v876 = vsel %vm400, %v753, 0
        %878 = vmatprep.subr.mxu0 0.0
        %879 = vmatpush1.msra.mxu0 0.0
        %880 = vmatprep.subr.mxu0 0.0
        %881 = vmatpush1.msra.mxu0 0.0
        %882 = vmatprep.subr.mxu0 0.0
        %883 = vmatpush1.msra.mxu0 0.0
        %884 = vmatprep.subr.mxu0 0.0
        %885 = vmatpush1.msra.mxu0 0.0
        %886 = vmatprep.subr.mxu0 0.0
        %887 = vmatpush1.msra.mxu0 0.0
        %888 = vmatprep.subr.mxu0 0.0
        %889 = vmatpush1.msra.mxu0 0.0
        %890 = vmatprep.subr.mxu0 0.0
        %891 = vmatpush1.msra.mxu0 0.0
        %892 = vmatprep.subr.mxu0 0.0
        %893 = vmatpush1.msra.mxu0 0.0
        %894 = vmatprep.subr.mxu0 %v769
        %895 = vmatpush1.msra.mxu0 %v768
        %896 = vmatprep.subr.mxu0 %v767
        %897 = vmatpush1.msra.mxu0 %v766
        %898 = vmatprep.subr.mxu0 %v765
        %899 = vmatpush1.msra.mxu0 %v764
        %900 = vmatprep.subr.mxu0 %v763
        %901 = vmatpush1.msra.mxu0 %v762
        %902 = vmatprep.subr.mxu0 %v761
        %903 = vmatpush1.msra.mxu0 %v760
        %904 = vmatprep.subr.mxu0 %v759
        %905 = vmatpush1.msra.mxu0 %v758
        %906 = vmatprep.subr.mxu0 %v757
        %907 = vmatpush1.msra.mxu0 %v756
        %908 = vmatprep.subr.mxu0 %v755
        %909 = vmatpush1.msra.mxu0 %v754
        %910 = vmatprep.subr.mxu0 0.0
        %911 = vmatpush2.msra.mxu0 0.0
        %912 = vmatprep.subr.mxu0 0.0
        %913 = vmatpush2.msra.mxu0 0.0
        %914 = vmatprep.subr.mxu0 0.0
        %915 = vmatpush2.msra.mxu0 0.0
        %916 = vmatprep.subr.mxu0 0.0
        %917 = vmatpush2.msra.mxu0 0.0
        %918 = vmatprep.subr.mxu0 0.0
        %919 = vmatpush2.msra.mxu0 0.0
        %920 = vmatprep.subr.mxu0 0.0
        %921 = vmatpush2.msra.mxu0 0.0
        %922 = vmatprep.subr.mxu0 0.0
        %923 = vmatpush2.msra.mxu0 0.0
        %924 = vmatprep.subr.mxu0 0.0
        %925 = vmatpush2.msra.mxu0 0.0
        %926 = vmatprep.subr.mxu0 0.0
        %927 = vmatpush2.msra.mxu0 0.0
        %928 = vmatprep.subr.mxu0 0.0
        %929 = vmatpush2.msra.mxu0 0.0
        %930 = vmatprep.subr.mxu0 0.0
        %931 = vmatpush2.msra.mxu0 0.0
        %932 = vmatprep.subr.mxu0 0.0
        %933 = vmatpush2.msra.mxu0 0.0
        %934 = vmatprep.subr.mxu0 0.0
        %935 = vmatpush2.msra.mxu0 0.0
        %936 = vmatprep.subr.mxu0 0.0
        %937 = vmatpush2.msra.mxu0 0.0
        %938 = vmatprep.subr.mxu0 0.0
        %939 = vmatpush2.msra.mxu0 0.0
        %940 = vmatprep.subr.mxu0 0.0
        %941 = vmatpush2.msra.mxu0 0.0
        %942 = vmatprep.mubr.f32.mxu0 0.0
        %943 = vmatmul.mubr.f32.gmra.mxu0 %v783
        %v944 = vpop.f32.mrf.mxu0
        %v945 = vadd.f32 %v775, %v944
        %v946 = vpop.f32.mrf.mxu0
        %v947 = vadd.f32 %v779, %v946
        %948 = vmatprep.mubr.f32.mxu0 0.0
        %949 = vmatmul.mubr.f32.gmra.mxu0 %v786
        %v950 = vpop.f32.mrf.mxu0
        %v951 = vadd.f32 %v775, %v950
        %v952 = vpop.f32.mrf.mxu0
        %v953 = vadd.f32 %v779, %v952
        %954 = vmatprep.mubr.f32.mxu0 0.0
        %955 = vmatmul.mubr.f32.gmra.mxu0 %v789
        %v956 = vpop.f32.mrf.mxu0
        %v957 = vadd.f32 %v775, %v956
        %v958 = vpop.f32.mrf.mxu0
        %v959 = vadd.f32 %v779, %v958
        %960 = vmatprep.mubr.f32.mxu0 0.0
        %961 = vmatmul.mubr.f32.gmra.mxu0 %v792
        %v962 = vpop.f32.mrf.mxu0
        %v963 = vadd.f32 %v775, %v962
        %v964 = vpop.f32.mrf.mxu0
        %v965 = vadd.f32 %v779, %v964
        %966 = vmatprep.mubr.f32.mxu0 0.0
        %967 = vmatmul.mubr.f32.gmra.mxu0 %v795
        %v968 = vpop.f32.mrf.mxu0
        %v969 = vadd.f32 %v775, %v968
        %v970 = vpop.f32.mrf.mxu0
        %v971 = vadd.f32 %v779, %v970
        %972 = vmatprep.mubr.f32.mxu0 0.0
        %973 = vmatmul.mubr.f32.gmra.mxu0 %v798
        %v974 = vpop.f32.mrf.mxu0
        %v975 = vadd.f32 %v775, %v974
        %v976 = vpop.f32.mrf.mxu0
        %v977 = vadd.f32 %v779, %v976
        %978 = vmatprep.mubr.f32.mxu0 0.0
        %979 = vmatmul.mubr.f32.gmra.mxu0 %v801
        %v980 = vpop.f32.mrf.mxu0
        %v981 = vadd.f32 %v775, %v980
        %v982 = vpop.f32.mrf.mxu0
        %v983 = vadd.f32 %v779, %v982
        %984 = vmatprep.mubr.f32.mxu0 0.0
        %985 = vmatmul.mubr.f32.gmra.mxu0 %v804
        %v986 = vpop.f32.mrf.mxu0
        %v987 = vadd.f32 %v775, %v986
        %v988 = vpop.f32.mrf.mxu0
        %v989 = vadd.f32 %v779, %v988
        %990 = vmatprep.mubr.f32.mxu0 0.0
        %991 = vmatmul.mubr.f32.gmra.mxu0 %v807
        %v992 = vpop.f32.mrf.mxu0
        %v993 = vadd.f32 %v775, %v992
        %v994 = vpop.f32.mrf.mxu0
        %v995 = vadd.f32 %v779, %v994
        %996 = vmatprep.mubr.f32.mxu0 0.0
        %997 = vmatmul.mubr.f32.gmra.mxu0 %v810
        %v998 = vpop.f32.mrf.mxu0
        %v999 = vadd.f32 %v775, %v998
        %v1000 = vpop.f32.mrf.mxu0
        %v1001 = vadd.f32 %v779, %v1000
        %1002 = vmatprep.mubr.f32.mxu0 0.0
        %1003 = vmatmul.mubr.f32.gmra.mxu0 %v813
        %v1004 = vpop.f32.mrf.mxu0
        %v1005 = vadd.f32 %v775, %v1004
        %v1006 = vpop.f32.mrf.mxu0
        %v1007 = vadd.f32 %v779, %v1006
        %1008 = vmatprep.mubr.f32.mxu0 0.0
        %1009 = vmatmul.mubr.f32.gmra.mxu0 %v816
        %v1010 = vpop.f32.mrf.mxu0
        %v1011 = vadd.f32 %v775, %v1010
        %v1012 = vpop.f32.mrf.mxu0
        %v1013 = vadd.f32 %v779, %v1012
        %1014 = vmatprep.mubr.f32.mxu0 0.0
        %1015 = vmatmul.mubr.f32.gmra.mxu0 %v819
        %v1016 = vpop.f32.mrf.mxu0
        %v1017 = vadd.f32 %v775, %v1016
        %v1018 = vpop.f32.mrf.mxu0
        %v1019 = vadd.f32 %v779, %v1018
        %1020 = vmatprep.mubr.f32.mxu0 0.0
        %1021 = vmatmul.mubr.f32.gmra.mxu0 %v822
        %v1022 = vpop.f32.mrf.mxu0
        %v1023 = vadd.f32 %v775, %v1022
        %v1024 = vpop.f32.mrf.mxu0
        %v1025 = vadd.f32 %v779, %v1024
        %1026 = vmatprep.mubr.f32.mxu0 0.0
        %1027 = vmatmul.mubr.f32.gmra.mxu0 %v825
        %v1028 = vpop.f32.mrf.mxu0
        %v1029 = vadd.f32 %v775, %v1028
        %v1030 = vpop.f32.mrf.mxu0
        %v1031 = vadd.f32 %v779, %v1030
        %1032 = vmatprep.mubr.f32.mxu0 0.0
        %1033 = vmatmul.mubr.f32.gmra.mxu0 %v828
        %v1034 = vpop.f32.mrf.mxu0
        %v1035 = vadd.f32 %v775, %v1034
        %v1036 = vpop.f32.mrf.mxu0
        %v1037 = vadd.f32 %v779, %v1036
        %1038 = vmatprep.mubr.f32.mxu0 0.0
        %1039 = vmatmul.mubr.f32.gmra.mxu0 %v831
        %v1040 = vpop.f32.mrf.mxu0
        %v1041 = vadd.f32 %v775, %v1040
        %v1042 = vpop.f32.mrf.mxu0
        %v1043 = vadd.f32 %v779, %v1042
        %1044 = vmatprep.mubr.f32.mxu0 0.0
        %1045 = vmatmul.mubr.f32.gmra.mxu0 %v834
        %v1046 = vpop.f32.mrf.mxu0
        %v1047 = vadd.f32 %v775, %v1046
        %v1048 = vpop.f32.mrf.mxu0
        %v1049 = vadd.f32 %v779, %v1048
        %1050 = vmatprep.mubr.f32.mxu0 0.0
        %1051 = vmatmul.mubr.f32.gmra.mxu0 %v837
        %v1052 = vpop.f32.mrf.mxu0
        %v1053 = vadd.f32 %v775, %v1052
        %v1054 = vpop.f32.mrf.mxu0
        %v1055 = vadd.f32 %v779, %v1054
        %1056 = vmatprep.mubr.f32.mxu0 0.0
        %1057 = vmatmul.mubr.f32.gmra.mxu0 %v840
        %v1058 = vpop.f32.mrf.mxu0
        %v1059 = vadd.f32 %v775, %v1058
        %v1060 = vpop.f32.mrf.mxu0
        %v1061 = vadd.f32 %v779, %v1060
        %1062 = vmatprep.mubr.f32.mxu0 0.0
        %1063 = vmatmul.mubr.f32.gmra.mxu0 %v843
        %v1064 = vpop.f32.mrf.mxu0
        %v1065 = vadd.f32 %v775, %v1064
        %v1066 = vpop.f32.mrf.mxu0
        %v1067 = vadd.f32 %v779, %v1066
        %1068 = vmatprep.mubr.f32.mxu0 0.0
        %1069 = vmatmul.mubr.f32.gmra.mxu0 %v846
        %v1070 = vpop.f32.mrf.mxu0
        %v1071 = vadd.f32 %v775, %v1070
        %v1072 = vpop.f32.mrf.mxu0
        %v1073 = vadd.f32 %v779, %v1072
        %1074 = vmatprep.mubr.f32.mxu0 0.0
        %1075 = vmatmul.mubr.f32.gmra.mxu0 %v849
        %v1076 = vpop.f32.mrf.mxu0
        %v1077 = vadd.f32 %v775, %v1076
        %v1078 = vpop.f32.mrf.mxu0
        %v1079 = vadd.f32 %v779, %v1078
        %1080 = vmatprep.mubr.f32.mxu0 0.0
        %1081 = vmatmul.mubr.f32.gmra.mxu0 %v852
        %v1082 = vpop.f32.mrf.mxu0
        %v1083 = vadd.f32 %v775, %v1082
        %v1084 = vpop.f32.mrf.mxu0
        %v1085 = vadd.f32 %v779, %v1084
        %1086 = vmatprep.mubr.f32.mxu0 0.0
        %1087 = vmatmul.mubr.f32.gmra.mxu0 %v855
        %v1088 = vpop.f32.mrf.mxu0
        %v1089 = vadd.f32 %v775, %v1088
        %v1090 = vpop.f32.mrf.mxu0
        %v1091 = vadd.f32 %v779, %v1090
        %1092 = vmatprep.mubr.f32.mxu0 0.0
        %1093 = vmatmul.mubr.f32.gmra.mxu0 %v858
        %v1094 = vpop.f32.mrf.mxu0
        %v1095 = vadd.f32 %v775, %v1094
        %v1096 = vpop.f32.mrf.mxu0
        %v1097 = vadd.f32 %v779, %v1096
        %1098 = vmatprep.mubr.f32.mxu0 0.0
        %1099 = vmatmul.mubr.f32.gmra.mxu0 %v861
        %v1100 = vpop.f32.mrf.mxu0
        %v1101 = vadd.f32 %v775, %v1100
        %v1102 = vpop.f32.mrf.mxu0
        %v1103 = vadd.f32 %v779, %v1102
        %1104 = vmatprep.mubr.f32.mxu0 0.0
        %1105 = vmatmul.mubr.f32.gmra.mxu0 %v864
        %v1106 = vpop.f32.mrf.mxu0
        %v1107 = vadd.f32 %v775, %v1106
        %v1108 = vpop.f32.mrf.mxu0
        %v1109 = vadd.f32 %v779, %v1108
        %1110 = vmatprep.mubr.f32.mxu0 0.0
        %1111 = vmatmul.mubr.f32.gmra.mxu0 %v867
        %v1112 = vpop.f32.mrf.mxu0
        %v1113 = vadd.f32 %v775, %v1112
        %v1114 = vpop.f32.mrf.mxu0
        %v1115 = vadd.f32 %v779, %v1114
        %1116 = vmatprep.mubr.f32.mxu0 0.0
        %1117 = vmatmul.mubr.f32.gmra.mxu0 %v870
        %v1118 = vpop.f32.mrf.mxu0
        %v1119 = vadd.f32 %v775, %v1118
        %v1120 = vpop.f32.mrf.mxu0
        %v1121 = vadd.f32 %v779, %v1120
        %1122 = vmatprep.mubr.f32.mxu0 0.0
        %1123 = vmatmul.mubr.f32.gmra.mxu0 %v873
        %v1124 = vpop.f32.mrf.mxu0
        %v1125 = vadd.f32 %v775, %v1124
        %v1126 = vpop.f32.mrf.mxu0
        %v1127 = vadd.f32 %v779, %v1126
        %1128 = vmatprep.mubr.f32.mxu0 0.0
        %1129 = vmatmul.mubr.f32.gmra.mxu0 %v876
        %v1130 = vpop.f32.mrf.mxu0
        %v1131 = vadd.f32 %v775, %v1130
        %v1132 = vpop.f32.mrf.mxu0
        %v1133 = vadd.f32 %v779, %v1132
        %1134 = vdwg.mxu0
        %p1135 = scmp.eq.s32.totalorder %s30, 0
        // Predicated region
        $region45: #{tpu_custom_call.1} parent=43 // pred_check
          %p1136 = pneg %p1135
        $region46: #{tpu_custom_call.1} parent=43 // pred_check_branch
          %1138 = sbr.rel (%p1136) target = $region48
        $region47: #{tpu_custom_call.1} parent=43 // pred_region
          %1139 = vst [vmem:[%s324] sm:$0xff] 0.0
          %1140 = vst [vmem:[%s324 + $0x8] sm:$0xff] 0.0
          %1141 = vst [vmem:[%s324 + $0x10] sm:$0xff] 0.0
          %1142 = vst [vmem:[%s324 + $0x18] sm:$0xff] 0.0
          %1143 = vst [vmem:[%s324 + $0x20] sm:$0xff] 0.0
          %1144 = vst [vmem:[%s324 + $0x28] sm:$0xff] 0.0
          %1145 = vst [vmem:[%s324 + $0x30] sm:$0xff] 0.0
          %1146 = vst [vmem:[%s324 + $0x38] sm:$0xff] 0.0
          %1147 = vst [vmem:[%s324 + $0x40] sm:$0xff] 0.0
          %1148 = vst [vmem:[%s324 + $0x48] sm:$0xff] 0.0
          %1149 = vst [vmem:[%s324 + $0x50] sm:$0xff] 0.0
          %1150 = vst [vmem:[%s324 + $0x58] sm:$0xff] 0.0
          %1151 = vst [vmem:[%s324 + $0x60] sm:$0xff] 0.0
          %1152 = vst [vmem:[%s324 + $0x68] sm:$0xff] 0.0
          %1153 = vst [vmem:[%s324 + $0x70] sm:$0xff] 0.0
          %1154 = vst [vmem:[%s324 + $0x78] sm:$0xff] 0.0
          %1155 = vst [vmem:[%s331] sm:$0xff] 0.0
          %1156 = vst [vmem:[#allocation2] sm:$0x1] 0.0
          %1157 = vst [vmem:[#allocation3] sm:$0x1] 0.0
          %1158 = vst [vmem:[#allocation4] sm:$0x1] 0.0
        $region48: #{tpu_custom_call.1} parent=43 // pred_fallthru
          _
        %v1159 = vld [vmem:[%s324] sm:$0xff]
        %v1160 = vld [vmem:[%s324 + $0x8] sm:$0xff]
        %v1161 = vld [vmem:[%s324 + $0x10] sm:$0xff]
        %v1162 = vld [vmem:[%s324 + $0x18] sm:$0xff]
        %v1163 = vld [vmem:[%s324 + $0x20] sm:$0xff]
        %v1164 = vld [vmem:[%s324 + $0x28] sm:$0xff]
        %v1165 = vld [vmem:[%s324 + $0x30] sm:$0xff]
        %v1166 = vld [vmem:[%s324 + $0x38] sm:$0xff]
        %v1167 = vld [vmem:[%s324 + $0x40] sm:$0xff]
        %v1168 = vld [vmem:[%s324 + $0x48] sm:$0xff]
        %v1169 = vld [vmem:[%s324 + $0x50] sm:$0xff]
        %v1170 = vld [vmem:[%s324 + $0x58] sm:$0xff]
        %v1171 = vld [vmem:[%s324 + $0x60] sm:$0xff]
        %v1172 = vld [vmem:[%s324 + $0x68] sm:$0xff]
        %v1173 = vld [vmem:[%s324 + $0x70] sm:$0xff]
        %v1174 = vld [vmem:[%s324 + $0x78] sm:$0xff]
        %1175 = vxpose.xlu0.b32.start [1/16] %v945, 128
        %1176 = vxpose.xlu0.b32.cont [2/16] %v951, 128
        %1177 = vxpose.xlu0.b32.cont [3/16] %v957, 128
        %1178 = vxpose.xlu0.b32.cont [4/16] %v963, 128
        %1179 = vxpose.xlu0.b32.cont [5/16] %v969, 128
        %1180 = vxpose.xlu0.b32.cont [6/16] %v975, 128
        %1181 = vxpose.xlu0.b32.cont [7/16] %v981, 128
        %1182 = vxpose.xlu0.b32.cont [8/16] %v987, 128
        %1183 = vxpose.xlu0.b32.cont [9/16] %v993, 128
        %1184 = vxpose.xlu0.b32.cont [10/16] %v999, 128
        %1185 = vxpose.xlu0.b32.cont [11/16] %v1005, 128
        %1186 = vxpose.xlu0.b32.cont [12/16] %v1011, 128
        %1187 = vxpose.xlu0.b32.cont [13/16] %v1017, 128
        %1188 = vxpose.xlu0.b32.cont [14/16] %v1023, 128
        %1189 = vxpose.xlu0.b32.cont [15/16] %v1029, 128
        %1190 = vxpose.xlu0.b32.end [16/16] %v1035, 128
        %v1191 = vpop.trf.xlu0
        %v1192 = vpop.trf.xlu0
        %v1193 = vpop.trf.xlu0
        %v1194 = vpop.trf.xlu0
        %v1195 = vpop.trf.xlu0
        %v1196 = vpop.trf.xlu0
        %v1197 = vpop.trf.xlu0
        %v1198 = vpop.trf.xlu0
        %v1199 = vpop.trf.xlu0
        %v1200 = vpop.trf.xlu0
        %v1201 = vpop.trf.xlu0
        %v1202 = vpop.trf.xlu0
        %v1203 = vpop.trf.xlu0
        %v1204 = vpop.trf.xlu0
        %v1205 = vpop.trf.xlu0
        %v1206 = vpop.trf.xlu0
        %1207 = vxpose.xlu0.b32.start [1/16] %v1041, 128
        %1208 = vxpose.xlu0.b32.cont [2/16] %v1047, 128
        %1209 = vxpose.xlu0.b32.cont [3/16] %v1053, 128
        %1210 = vxpose.xlu0.b32.cont [4/16] %v1059, 128
        %1211 = vxpose.xlu0.b32.cont [5/16] %v1065, 128
        %1212 = vxpose.xlu0.b32.cont [6/16] %v1071, 128
        %1213 = vxpose.xlu0.b32.cont [7/16] %v1077, 128
        %1214 = vxpose.xlu0.b32.cont [8/16] %v1083, 128
        %1215 = vxpose.xlu0.b32.cont [9/16] %v1089, 128
        %1216 = vxpose.xlu0.b32.cont [10/16] %v1095, 128
        %1217 = vxpose.xlu0.b32.cont [11/16] %v1101, 128
        %1218 = vxpose.xlu0.b32.cont [12/16] %v1107, 128
        %1219 = vxpose.xlu0.b32.cont [13/16] %v1113, 128
        %1220 = vxpose.xlu0.b32.cont [14/16] %v1119, 128
        %1221 = vxpose.xlu0.b32.cont [15/16] %v1125, 128
        %1222 = vxpose.xlu0.b32.end [16/16] %v1131, 128
        %v1223 = vpop.trf.xlu0
        %v1224 = vpop.trf.xlu0
        %v1225 = vpop.trf.xlu0
        %v1226 = vpop.trf.xlu0
        %v1227 = vpop.trf.xlu0
        %v1228 = vpop.trf.xlu0
        %v1229 = vpop.trf.xlu0
        %v1230 = vpop.trf.xlu0
        %v1231 = vpop.trf.xlu0
        %v1232 = vpop.trf.xlu0
        %v1233 = vpop.trf.xlu0
        %v1234 = vpop.trf.xlu0
        %v1235 = vpop.trf.xlu0
        %v1236 = vpop.trf.xlu0
        %v1237 = vpop.trf.xlu0
        %v1238 = vpop.trf.xlu0
        %1239 = vmatprep.subr.mxu0 0.0
        %1240 = vmatpush1.msra.mxu0 %v1037
        %1241 = vmatprep.subr.mxu0 0.0
        %1242 = vmatpush1.msra.mxu0 %v1031
        %1243 = vmatprep.subr.mxu0 0.0
        %1244 = vmatpush1.msra.mxu0 %v1025
        %1245 = vmatprep.subr.mxu0 0.0
        %1246 = vmatpush1.msra.mxu0 %v1019
        %1247 = vmatprep.subr.mxu0 0.0
        %1248 = vmatpush1.msra.mxu0 %v1013
        %1249 = vmatprep.subr.mxu0 0.0
        %1250 = vmatpush1.msra.mxu0 %v1007
        %1251 = vmatprep.subr.mxu0 0.0
        %1252 = vmatpush1.msra.mxu0 %v1001
        %1253 = vmatprep.subr.mxu0 0.0
        %1254 = vmatpush1.msra.mxu0 %v995
        %1255 = vmatprep.subr.mxu0 0.0
        %1256 = vmatpush1.msra.mxu0 %v989
        %1257 = vmatprep.subr.mxu0 0.0
        %1258 = vmatpush1.msra.mxu0 %v983
        %1259 = vmatprep.subr.mxu0 0.0
        %1260 = vmatpush1.msra.mxu0 %v977
        %1261 = vmatprep.subr.mxu0 0.0
        %1262 = vmatpush1.msra.mxu0 %v971
        %1263 = vmatprep.subr.mxu0 0.0
        %1264 = vmatpush1.msra.mxu0 %v965
        %1265 = vmatprep.subr.mxu0 0.0
        %1266 = vmatpush1.msra.mxu0 %v959
        %1267 = vmatprep.subr.mxu0 0.0
        %1268 = vmatpush1.msra.mxu0 %v953
        %1269 = vmatprep.subr.mxu0 0.0
        %1270 = vmatpush1.msra.mxu0 %v947
        %1271 = vmatprep.subr.mxu0 0.0
        %1272 = vmatpush2.msra.mxu0 %v1133
        %1273 = vmatprep.subr.mxu0 0.0
        %1274 = vmatpush2.msra.mxu0 %v1127
        %1275 = vmatprep.subr.mxu0 0.0
        %1276 = vmatpush2.msra.mxu0 %v1121
        %1277 = vmatprep.subr.mxu0 0.0
        %1278 = vmatpush2.msra.mxu0 %v1115
        %1279 = vmatprep.subr.mxu0 0.0
        %1280 = vmatpush2.msra.mxu0 %v1109
        %1281 = vmatprep.subr.mxu0 0.0
        %1282 = vmatpush2.msra.mxu0 %v1103
        %1283 = vmatprep.subr.mxu0 0.0
        %1284 = vmatpush2.msra.mxu0 %v1097
        %1285 = vmatprep.subr.mxu0 0.0
        %1286 = vmatpush2.msra.mxu0 %v1091
        %1287 = vmatprep.subr.mxu0 0.0
        %1288 = vmatpush2.msra.mxu0 %v1085
        %1289 = vmatprep.subr.mxu0 0.0
        %1290 = vmatpush2.msra.mxu0 %v1079
        %1291 = vmatprep.subr.mxu0 0.0
        %1292 = vmatpush2.msra.mxu0 %v1073
        %1293 = vmatprep.subr.mxu0 0.0
        %1294 = vmatpush2.msra.mxu0 %v1067
        %1295 = vmatprep.subr.mxu0 0.0
        %1296 = vmatpush2.msra.mxu0 %v1061
        %1297 = vmatprep.subr.mxu0 0.0
        %1298 = vmatpush2.msra.mxu0 %v1055
        %1299 = vmatprep.subr.mxu0 0.0
        %1300 = vmatpush2.msra.mxu0 %v1049
        %1301 = vmatprep.subr.mxu0 0.0
        %1302 = vmatpush2.msra.mxu0 %v1043
        %1303 = vmatprep.mubr.f32.mxu0 %v1223
        %1304 = vmatmul.mubr.f32.gmra.mxu0 %v1191
        %v1305 = vpop.f32.mrf.mxu0
        %v1306 = vadd.f32 0.0, %v1305
        %v1307 = vpop.f32.mrf.mxu0
        %1308 = vmatprep.mubr.f32.mxu0 %v1224
        %1309 = vmatmul.mubr.f32.gmra.mxu0 %v1192
        %v1310 = vpop.f32.mrf.mxu0
        %v1311 = vadd.f32 0.0, %v1310
        %v1312 = vpop.f32.mrf.mxu0
        %1313 = vmatprep.mubr.f32.mxu0 %v1225
        %1314 = vmatmul.mubr.f32.gmra.mxu0 %v1193
        %v1315 = vpop.f32.mrf.mxu0
        %v1316 = vadd.f32 0.0, %v1315
        %v1317 = vpop.f32.mrf.mxu0
        %1318 = vmatprep.mubr.f32.mxu0 %v1226
        %1319 = vmatmul.mubr.f32.gmra.mxu0 %v1194
        %v1320 = vpop.f32.mrf.mxu0
        %v1321 = vadd.f32 0.0, %v1320
        %v1322 = vpop.f32.mrf.mxu0
        %1323 = vmatprep.mubr.f32.mxu0 %v1227
        %1324 = vmatmul.mubr.f32.gmra.mxu0 %v1195
        %v1325 = vpop.f32.mrf.mxu0
        %v1326 = vadd.f32 0.0, %v1325
        %v1327 = vpop.f32.mrf.mxu0
        %1328 = vmatprep.mubr.f32.mxu0 %v1228
        %1329 = vmatmul.mubr.f32.gmra.mxu0 %v1196
        %v1330 = vpop.f32.mrf.mxu0
        %v1331 = vadd.f32 0.0, %v1330
        %v1332 = vpop.f32.mrf.mxu0
        %1333 = vmatprep.mubr.f32.mxu0 %v1229
        %1334 = vmatmul.mubr.f32.gmra.mxu0 %v1197
        %v1335 = vpop.f32.mrf.mxu0
        %v1336 = vadd.f32 0.0, %v1335
        %v1337 = vpop.f32.mrf.mxu0
        %1338 = vmatprep.mubr.f32.mxu0 %v1230
        %1339 = vmatmul.mubr.f32.gmra.mxu0 %v1198
        %v1340 = vpop.f32.mrf.mxu0
        %v1341 = vadd.f32 0.0, %v1340
        %v1342 = vpop.f32.mrf.mxu0
        %1343 = vmatprep.mubr.f32.mxu0 %v1231
        %1344 = vmatmul.mubr.f32.gmra.mxu0 %v1199
        %v1345 = vpop.f32.mrf.mxu0
        %v1346 = vadd.f32 0.0, %v1345
        %v1347 = vpop.f32.mrf.mxu0
        %1348 = vmatprep.mubr.f32.mxu0 %v1232
        %1349 = vmatmul.mubr.f32.gmra.mxu0 %v1200
        %v1350 = vpop.f32.mrf.mxu0
        %v1351 = vadd.f32 0.0, %v1350
        %v1352 = vpop.f32.mrf.mxu0
        %1353 = vmatprep.mubr.f32.mxu0 %v1233
        %1354 = vmatmul.mubr.f32.gmra.mxu0 %v1201
        %v1355 = vpop.f32.mrf.mxu0
        %v1356 = vadd.f32 0.0, %v1355
        %v1357 = vpop.f32.mrf.mxu0
        %1358 = vmatprep.mubr.f32.mxu0 %v1234
        %1359 = vmatmul.mubr.f32.gmra.mxu0 %v1202
        %v1360 = vpop.f32.mrf.mxu0
        %v1361 = vadd.f32 0.0, %v1360
        %v1362 = vpop.f32.mrf.mxu0
        %1363 = vmatprep.mubr.f32.mxu0 %v1235
        %1364 = vmatmul.mubr.f32.gmra.mxu0 %v1203
        %v1365 = vpop.f32.mrf.mxu0
        %v1366 = vadd.f32 0.0, %v1365
        %v1367 = vpop.f32.mrf.mxu0
        %1368 = vmatprep.mubr.f32.mxu0 %v1236
        %1369 = vmatmul.mubr.f32.gmra.mxu0 %v1204
        %v1370 = vpop.f32.mrf.mxu0
        %v1371 = vadd.f32 0.0, %v1370
        %v1372 = vpop.f32.mrf.mxu0
        %1373 = vmatprep.mubr.f32.mxu0 %v1237
        %1374 = vmatmul.mubr.f32.gmra.mxu0 %v1205
        %v1375 = vpop.f32.mrf.mxu0
        %v1376 = vadd.f32 0.0, %v1375
        %v1377 = vpop.f32.mrf.mxu0
        %1378 = vmatprep.mubr.f32.mxu0 %v1238
        %1379 = vmatmul.mubr.f32.gmra.mxu0 %v1206
        %v1380 = vpop.f32.mrf.mxu0
        %v1381 = vadd.f32 0.0, %v1380
        %v1382 = vpop.f32.mrf.mxu0
        %1383 = vdwg.mxu0
        %v1384 = vadd.f32 %v1159, %v1306
        %v1385 = vadd.f32 %v1160, %v1311
        %v1386 = vadd.f32 %v1161, %v1316
        %v1387 = vadd.f32 %v1162, %v1321
        %v1388 = vadd.f32 %v1163, %v1326
        %v1389 = vadd.f32 %v1164, %v1331
        %v1390 = vadd.f32 %v1165, %v1336
        %v1391 = vadd.f32 %v1166, %v1341
        %v1392 = vadd.f32 %v1167, %v1346
        %v1393 = vadd.f32 %v1168, %v1351
        %v1394 = vadd.f32 %v1169, %v1356
        %v1395 = vadd.f32 %v1170, %v1361
        %v1396 = vadd.f32 %v1171, %v1366
        %v1397 = vadd.f32 %v1172, %v1371
        %v1398 = vadd.f32 %v1173, %v1376
        %v1399 = vadd.f32 %v1174, %v1381
        %1400 = vst [vmem:[%s324] sm:$0xff] %v1384
        %1401 = vst [vmem:[%s324 + $0x8] sm:$0xff] %v1385
        %1402 = vst [vmem:[%s324 + $0x10] sm:$0xff] %v1386
        %1403 = vst [vmem:[%s324 + $0x18] sm:$0xff] %v1387
        %1404 = vst [vmem:[%s324 + $0x20] sm:$0xff] %v1388
        %1405 = vst [vmem:[%s324 + $0x28] sm:$0xff] %v1389
        %1406 = vst [vmem:[%s324 + $0x30] sm:$0xff] %v1390
        %1407 = vst [vmem:[%s324 + $0x38] sm:$0xff] %v1391
        %1408 = vst [vmem:[%s324 + $0x40] sm:$0xff] %v1392
        %1409 = vst [vmem:[%s324 + $0x48] sm:$0xff] %v1393
        %1410 = vst [vmem:[%s324 + $0x50] sm:$0xff] %v1394
        %1411 = vst [vmem:[%s324 + $0x58] sm:$0xff] %v1395
        %1412 = vst [vmem:[%s324 + $0x60] sm:$0xff] %v1396
        %1413 = vst [vmem:[%s324 + $0x68] sm:$0xff] %v1397
        %1414 = vst [vmem:[%s324 + $0x70] sm:$0xff] %v1398
        %1415 = vst [vmem:[%s324 + $0x78] sm:$0xff] %v1399
        %v1416 = vld [vmem:[#allocation2] sm:$0x1]
        %v1417 = vadd.f32 %v945, %v951
        %v1418 = vadd.f32 %v1417, %v957
        %v1419 = vadd.f32 %v1418, %v963
        %v1420 = vadd.f32 %v1419, %v969
        %v1421 = vadd.f32 %v1420, %v975
        %v1422 = vadd.f32 %v1421, %v981
        %v1423 = vadd.f32 %v1422, %v987
        %v1424 = vadd.f32 %v1423, %v993
        %v1425 = vadd.f32 %v1424, %v999
        %v1426 = vadd.f32 %v1425, %v1005
        %v1427 = vadd.f32 %v1426, %v1011
        %v1428 = vadd.f32 %v1427, %v1017
        %v1429 = vadd.f32 %v1428, %v1023
        %v1430 = vadd.f32 %v1429, %v1029
        %v1431 = vadd.f32 %v1430, %v1035
        %v1432 = vadd.f32 %v1431, %v1041
        %v1433 = vadd.f32 %v1432, %v1047
        %v1434 = vadd.f32 %v1433, %v1053
        %v1435 = vadd.f32 %v1434, %v1059
        %v1436 = vadd.f32 %v1435, %v1065
        %v1437 = vadd.f32 %v1436, %v1071
        %v1438 = vadd.f32 %v1437, %v1077
        %v1439 = vadd.f32 %v1438, %v1083
        %v1440 = vadd.f32 %v1439, %v1089
        %v1441 = vadd.f32 %v1440, %v1095
        %v1442 = vadd.f32 %v1441, %v1101
        %v1443 = vadd.f32 %v1442, %v1107
        %v1444 = vadd.f32 %v1443, %v1113
        %v1445 = vadd.f32 %v1444, %v1119
        %v1446 = vadd.f32 %v1445, %v1125
        %v1447 = vadd.f32 %v1446, %v1131
        %v1448 = vrot.slane %v1447, 4
        %v1449 = vadd.f32 %v1447, %v1448
        %v1450 = vrot.slane %v1449, 2
        %v1451 = vadd.f32 %v1449, %v1450
        %v1452 = vrot.slane %v1451, 1
        %v1453 = vadd.f32 %v1451, %v1452
        %v1454 = vadd.f32 %v1416, %v1453
        %1455 = vst [vmem:[#allocation2] sm:$0x1] %v1454
        %v1456 = vld [vmem:[#allocation3] sm:$0x1]
        %v1457 = vmul.f32 %v564, %v564
        %v1458 = vmul.f32 %v569, %v569
        %v1459 = vmul.f32 %v574, %v574
        %v1460 = vmul.f32 %v579, %v579
        %v1461 = vmul.f32 %v584, %v584
        %v1462 = vmul.f32 %v589, %v589
        %v1463 = vmul.f32 %v594, %v594
        %v1464 = vmul.f32 %v599, %v599
        %v1465 = vmul.f32 %v604, %v604
        %v1466 = vmul.f32 %v609, %v609
        %v1467 = vmul.f32 %v614, %v614
        %v1468 = vmul.f32 %v619, %v619
        %v1469 = vmul.f32 %v624, %v624
        %v1470 = vmul.f32 %v629, %v629
        %v1471 = vmul.f32 %v634, %v634
        %v1472 = vmul.f32 %v639, %v639
        %v1473 = vmul.f32 %v644, %v644
        %v1474 = vmul.f32 %v649, %v649
        %v1475 = vmul.f32 %v654, %v654
        %v1476 = vmul.f32 %v659, %v659
        %v1477 = vmul.f32 %v664, %v664
        %v1478 = vmul.f32 %v669, %v669
        %v1479 = vmul.f32 %v674, %v674
        %v1480 = vmul.f32 %v679, %v679
        %v1481 = vmul.f32 %v684, %v684
        %v1482 = vmul.f32 %v689, %v689
        %v1483 = vmul.f32 %v694, %v694
        %v1484 = vmul.f32 %v699, %v699
        %v1485 = vmul.f32 %v704, %v704
        %v1486 = vmul.f32 %v709, %v709
        %v1487 = vmul.f32 %v714, %v714
        %v1488 = vmul.f32 %v719, %v719
        %v1489 = vadd.f32 %v1457, %v1458
        %v1490 = vadd.f32 %v1489, %v1459
        %v1491 = vadd.f32 %v1490, %v1460
        %v1492 = vadd.f32 %v1491, %v1461
        %v1493 = vadd.f32 %v1492, %v1462
        %v1494 = vadd.f32 %v1493, %v1463
        %v1495 = vadd.f32 %v1494, %v1464
        %v1496 = vadd.f32 %v1495, %v1465
        %v1497 = vadd.f32 %v1496, %v1466
        %v1498 = vadd.f32 %v1497, %v1467
        %v1499 = vadd.f32 %v1498, %v1468
        %v1500 = vadd.f32 %v1499, %v1469
        %v1501 = vadd.f32 %v1500, %v1470
        %v1502 = vadd.f32 %v1501, %v1471
        %v1503 = vadd.f32 %v1502, %v1472
        %v1504 = vadd.f32 %v1503, %v1473
        %v1505 = vadd.f32 %v1504, %v1474
        %v1506 = vadd.f32 %v1505, %v1475
        %v1507 = vadd.f32 %v1506, %v1476
        %v1508 = vadd.f32 %v1507, %v1477
        %v1509 = vadd.f32 %v1508, %v1478
        %v1510 = vadd.f32 %v1509, %v1479
        %v1511 = vadd.f32 %v1510, %v1480
        %v1512 = vadd.f32 %v1511, %v1481
        %v1513 = vadd.f32 %v1512, %v1482
        %v1514 = vadd.f32 %v1513, %v1483
        %v1515 = vadd.f32 %v1514, %v1484
        %v1516 = vadd.f32 %v1515, %v1485
        %v1517 = vadd.f32 %v1516, %v1486
        %v1518 = vadd.f32 %v1517, %v1487
        %v1519 = vadd.f32 %v1518, %v1488
        %v1520 = vrot.slane %v1519, 4
        %v1521 = vadd.f32 %v1519, %v1520
        %v1522 = vrot.slane %v1521, 2
        %v1523 = vadd.f32 %v1521, %v1522
        %v1524 = vrot.slane %v1523, 1
        %v1525 = vadd.f32 %v1523, %v1524
        %v1526 = vadd.f32 %v1456, %v1525
        %1527 = vst [vmem:[#allocation3] sm:$0x1] %v1526
        %v1528 = vld [vmem:[#allocation4] sm:$0x1]
        %v1529 = vmul.f32 %v945, %v945
        %v1530 = vmul.f32 %v951, %v951
        %v1531 = vmul.f32 %v957, %v957
        %v1532 = vmul.f32 %v963, %v963
        %v1533 = vmul.f32 %v969, %v969
        %v1534 = vmul.f32 %v975, %v975
        %v1535 = vmul.f32 %v981, %v981
        %v1536 = vmul.f32 %v987, %v987
        %v1537 = vmul.f32 %v993, %v993
        %v1538 = vmul.f32 %v999, %v999
        %v1539 = vmul.f32 %v1005, %v1005
        %v1540 = vmul.f32 %v1011, %v1011
        %v1541 = vmul.f32 %v1017, %v1017
        %v1542 = vmul.f32 %v1023, %v1023
        %v1543 = vmul.f32 %v1029, %v1029
        %v1544 = vmul.f32 %v1035, %v1035
        %v1545 = vmul.f32 %v1041, %v1041
        %v1546 = vmul.f32 %v1047, %v1047
        %v1547 = vmul.f32 %v1053, %v1053
        %v1548 = vmul.f32 %v1059, %v1059
        %v1549 = vmul.f32 %v1065, %v1065
        %v1550 = vmul.f32 %v1071, %v1071
        %v1551 = vmul.f32 %v1077, %v1077
        %v1552 = vmul.f32 %v1083, %v1083
        %v1553 = vmul.f32 %v1089, %v1089
        %v1554 = vmul.f32 %v1095, %v1095
        %v1555 = vmul.f32 %v1101, %v1101
        %v1556 = vmul.f32 %v1107, %v1107
        %v1557 = vmul.f32 %v1113, %v1113
        %v1558 = vmul.f32 %v1119, %v1119
        %v1559 = vmul.f32 %v1125, %v1125
        %v1560 = vmul.f32 %v1131, %v1131
        %v1561 = vadd.f32 %v1529, %v1530
        %v1562 = vadd.f32 %v1561, %v1531
        %v1563 = vadd.f32 %v1562, %v1532
        %v1564 = vadd.f32 %v1563, %v1533
        %v1565 = vadd.f32 %v1564, %v1534
        %v1566 = vadd.f32 %v1565, %v1535
        %v1567 = vadd.f32 %v1566, %v1536
        %v1568 = vadd.f32 %v1567, %v1537
        %v1569 = vadd.f32 %v1568, %v1538
        %v1570 = vadd.f32 %v1569, %v1539
        %v1571 = vadd.f32 %v1570, %v1540
        %v1572 = vadd.f32 %v1571, %v1541
        %v1573 = vadd.f32 %v1572, %v1542
        %v1574 = vadd.f32 %v1573, %v1543
        %v1575 = vadd.f32 %v1574, %v1544
        %v1576 = vadd.f32 %v1575, %v1545
        %v1577 = vadd.f32 %v1576, %v1546
        %v1578 = vadd.f32 %v1577, %v1547
        %v1579 = vadd.f32 %v1578, %v1548
        %v1580 = vadd.f32 %v1579, %v1549
        %v1581 = vadd.f32 %v1580, %v1550
        %v1582 = vadd.f32 %v1581, %v1551
        %v1583 = vadd.f32 %v1582, %v1552
        %v1584 = vadd.f32 %v1583, %v1553
        %v1585 = vadd.f32 %v1584, %v1554
        %v1586 = vadd.f32 %v1585, %v1555
        %v1587 = vadd.f32 %v1586, %v1556
        %v1588 = vadd.f32 %v1587, %v1557
        %v1589 = vadd.f32 %v1588, %v1558
        %v1590 = vadd.f32 %v1589, %v1559
        %v1591 = vadd.f32 %v1590, %v1560
        %v1592 = vrot.slane %v1591, 4
        %v1593 = vadd.f32 %v1591, %v1592
        %v1594 = vrot.slane %v1593, 2
        %v1595 = vadd.f32 %v1593, %v1594
        %v1596 = vrot.slane %v1595, 1
        %v1597 = vadd.f32 %v1595, %v1596
        %v1598 = vadd.f32 %v1528, %v1597
        %1599 = vst [vmem:[#allocation4] sm:$0x1] %v1598
        %p1600 = scmp.eq.s32.totalorder %s30, 1
        // Predicated region
        $region49: #{tpu_custom_call.1} parent=43 // pred_check
          %p1601 = pneg %p1600
        $region50: #{tpu_custom_call.1} parent=43 // pred_check_branch
          %1603 = sbr.rel (%p1601) target = $region52
        $region51: #{tpu_custom_call.1} parent=43 // pred_region
          %v1604 = vld [vmem:[#allocation2] sm:$0x1]
          %1605 = vst [vmem:[%s331] sm:$0x1] %v1604
          %v1606 = vld [vmem:[#allocation3] sm:$0x1]
          %1607 = vst [vmem:[%s331 + $0x1] sm:$0x1] %v1606
          %v1608 = vld [vmem:[#allocation4] sm:$0x1]
          %1609 = vst [vmem:[%s331 + $0x2] sm:$0x1] %v1608
        $region52: #{tpu_custom_call.1} parent=43 // pred_fallthru
          _
        %s1610 = sand.u32 %s189, 1
        %s1611 = scalar_lea.sflag [#allocation6], %s1610
        %s1612 = sand.u32 %s189, 1
        %s1613 = smul.addr %s1612, 128
        %s1614 = scalar_lea.vmem [#allocation5], %s1613
        %s1615 = sand.u32 %s215, 1
        %s1616 = scalar_lea.sflag [#allocation8], %s1615
        %s1617 = sand.u32 %s215, 1
        %s1618 = smul.addr %s1617, 8
        %s1619 = scalar_lea.vmem [#allocation7], %s1618
        // Predicated region
        $region53: #{tpu_custom_call.1} parent=43 // pred_check
          %p1620 = pneg %p199
        $region54: #{tpu_custom_call.1} parent=43 // pred_check_branch
          %1622 = sbr.rel (%p1620) target = $region56
        $region55: #{tpu_custom_call.1} parent=43 // pred_region
          %s1623 = smul.u32 16, %s29
          %s1625 = ssub.s32 2048, 2048
          %1626 = vsyncadd %s1611, %s1625
          %s1627 = smul.addr %s1623, 128
          %s1628 = scalar_lea.hbm %s6, %s1627
          %s1629 = sshll.u32 %s1614, 4
          %s1630 = int_to_ptr.vmem [resolvable:$true] %s1629
          %1635 = dma.vmem_to_hbm [thread:$0]  %s1630, 2048, %s1628, %s1611, 128, 128, 8
        $region56: #{tpu_custom_call.1} parent=43 // pred_fallthru
          _
        // Predicated region
        $region57: #{tpu_custom_call.1} parent=43 // pred_check
          %p1636 = pneg %p225
        $region58: #{tpu_custom_call.1} parent=43 // pred_check_branch
          %1638 = sbr.rel (%p1636) target = $region60
        $region59: #{tpu_custom_call.1} parent=43 // pred_region
          %s1640 = ssub.s32 128, 128
          %1641 = vsyncadd %s1616, %s1640
          %s1642 = smul.addr %s29, 128
          %s1643 = scalar_lea.hbm %s7, %s1642
          %s1645 = sshll.u32 %s1619, 4
          %s1646 = int_to_ptr.vmem [resolvable:$true] %s1645
          %1648 = dma.vmem_to_hbm [thread:$0]  %s1646, 128, %s1643, %s1616
        $region60: #{tpu_custom_call.1} parent=43 // pred_fallthru
          _
      $region44: #{tpu_custom_call.1} parent=5 // pred_fallthru
        _
      %p1649 = scmp.le.s32.totalorder 2, %s20
      // Predicated region
      $region61: #{tpu_custom_call.1} parent=5 // pred_check
        %p1650 = pneg %p1649
      $region62: #{tpu_custom_call.1} parent=5 // pred_check_branch
        %1652 = sbr.rel (%p1650) target = $region64
      $region63: #{tpu_custom_call.1} parent=5 // pred_region
        %s1653 = ssub.s32 %s20, 2
        // Predicated region
        $region65: #{tpu_custom_call.1} parent=63 // pred_check
          %p1654 = pneg %p205
        $region66: #{tpu_custom_call.1} parent=63 // pred_check_branch
          %1656 = sbr.rel (%p1654) target = $region68
        $region67: #{tpu_custom_call.1} parent=63 // pred_region
          %s1657 = sand.u32 %s190, 1
          %s1658 = scalar_lea.sflag [#allocation6], %s1657
          %s1659 = sand.u32 %s190, 1
          %s1660 = smul.addr %s1659, 128
          %s1661 = scalar_lea.vmem [#allocation5], %s1660
          %1662 = dma.done %s1658, 2048
        $region68: #{tpu_custom_call.1} parent=63 // pred_fallthru
          _
        // Predicated region
        $region69: #{tpu_custom_call.1} parent=63 // pred_check
          %p1663 = pneg %p231
        $region70: #{tpu_custom_call.1} parent=63 // pred_check_branch
          %1665 = sbr.rel (%p1663) target = $region72
        $region71: #{tpu_custom_call.1} parent=63 // pred_region
          %s1666 = sand.u32 %s216, 1
          %s1667 = scalar_lea.sflag [#allocation8], %s1666
          %s1668 = sand.u32 %s216, 1
          %s1669 = smul.addr %s1668, 8
          %s1670 = scalar_lea.vmem [#allocation7], %s1669
          %1671 = dma.done %s1667, 128
        $region72: #{tpu_custom_call.1} parent=63 // pred_fallthru
          _
      $region64: #{tpu_custom_call.1} parent=5 // pred_fallthru
        _
    $region6: #{tpu_custom_call.1} parent=1 // loop_footer
      %s24 = sadd.s32 1, %s20
    $region7: #{tpu_custom_call.1} parent=1 // loop_footer_branch
      %19 = sbr.rel target = $region3
    $region8: #{tpu_custom_call.1} parent=1 // loop_exit
      _
    %1672 = vsyncpa [#allocation6], 1
    %s1673 = scalar_lea.sflag [#allocation6], 1
    %1674 = vsyncpa %s1673, 1
    %1675 = vsyncpa [#allocation8], 1
    %s1676 = scalar_lea.sflag [#allocation8], 1
    %1677 = vsyncpa %s1676, 1

</llo_original>
